<compile_context>
chip_gen: v7x
topology: tpu7x:2x2x1
jax: 0.10.0
libtpu: 0.0.40
codegen_flags: <defaults>
</compile_context>

<pallas_src>
import math
import functools

import jax
import jax.numpy as jnp
from jax.experimental import pallas as pl
from jax.experimental.pallas import tpu as pltpu


# ----------------------------- kernel helpers ------------------------------

def _layernorm(x, gamma, beta, eps):
    # x: (M, D) f32; gamma/beta: (1, D) f32. Biased variance, like nn.LayerNorm.
    mu = jnp.mean(x, axis=-1, keepdims=True)
    var = jnp.mean((x - mu) ** 2, axis=-1, keepdims=True)
    return (x - mu) * jax.lax.rsqrt(var + eps) * gamma + beta


def _gelu_exact(x):
    # nn.GELU default (erf-based, exact), for parity with the PyTorch module.
    return 0.5 * x * (1.0 + jax.lax.erf(x * (1.0 / math.sqrt(2.0))))


# ------------------------------- the kernel --------------------------------

def encoder_layer_kernel(*refs, num_heads, head_size, eps, mask_mode, bblk):
    # One grid step == bblk batch elements; QKV / attention / LN / FFN all fused here.
    if mask_mode == "none":
        (x_ref, wqkv_ref, vecs_ref, bffn1_ref, w1t_ref, w2t_ref, out_ref) = refs
        mask_ref = None
    else:
        (x_ref, mask_ref, wqkv_ref, vecs_ref, bffn1_ref, w1t_ref, w2t_ref, out_ref) = refs

    D = num_heads * head_size
    cdt = wqkv_ref.dtype                       # MXU operand dtype (bf16 fast path or f32)
    approx_recip = jnp.dtype(cdt) != jnp.dtype(jnp.float32)

    xb = x_ref[...]                            # (bblk, S, D), input dtype
    S = xb.shape[1]
    x2 = xb.reshape(bblk * S, D)               # collapse leading dims (no lane movement)

    # Fused QKV projection over all bblk*S rows (the *head_size scale is already folded
    # into the Q columns of wqkv, so no per-score multiply is needed).
    qkv = jnp.dot(x2.astype(cdt), wqkv_ref[...],
                  preferred_element_type=jnp.float32)          # (bblk*S, 3D) f32 acc
    qkv = qkv.astype(cdt)

    if mask_mode == "shared":
        mask_shared = mask_ref[...].astype(jnp.float32)        # (S, S)

    # ---- attention: per batch element, per head (small static unrolled loops) ----
    attn_rows = []
    for bi in range(bblk):
        rows = slice(bi * S, (bi + 1) * S)
        if mask_mode == "shared":
            m_add = mask_shared
        elif mask_mode == "batch":
            m_add = mask_ref[bi].astype(jnp.float32)           # (S, S)
        head_outs = []
        for h in range(num_heads):
            c0 = h * head_size
            qh = qkv[rows, c0:c0 + head_size]
            kh = qkv[rows, D + c0:D + c0 + head_size]
            vh = qkv[rows, 2 * D + c0:2 * D + c0 + head_size]
            s = jnp.einsum("qd,kd->qk", qh, kh,
                           preferred_element_type=jnp.float32)  # (S, S) f32
            if mask_mode != "none":
                s = s + m_add
            m = jnp.max(s, axis=-1, keepdims=True)
            e = jnp.exp(s - m)
            denom = jnp.sum(e, axis=-1, keepdims=True)          # (S, 1)
            # Deferred normalization: un-normalized PV matmul, then rescale the (S, hd)
            # output instead of the (S, S) probability matrix.
            o = jnp.dot(e.astype(cdt), vh, preferred_element_type=jnp.float32)
            head_outs.append(o * pl.reciprocal(denom, approx=approx_recip))
        # No out-projection in the reference: heads are concatenated (lane-dense when hd%128==0).
        attn_rows.append(jnp.concatenate(head_outs, axis=-1))   # (S, D) f32
    attn = attn_rows[0] if bblk == 1 else jnp.concatenate(attn_rows, axis=0)  # (bblk*S, D)

    # ---- packed (5, D) layernorm / bias vectors (one DMA) ----
    vecs = vecs_ref[...]                                        # (5, D) f32
    g1, b1 = vecs[0:1, :], vecs[1:2, :]
    g2, b2 = vecs[2:3, :], vecs[3:4, :]
    b_ffn2 = vecs[4:5, :]

    # residual + norm1 (statistics in f32)
    h1 = x2.astype(jnp.float32) + attn
    n1 = _layernorm(h1, g1, b1, eps)

    # FFN: Linear -> GELU -> Linear (dropouts are identity); pre-transposed weights.
    y = jnp.dot(n1.astype(cdt), w1t_ref[...], preferred_element_type=jnp.float32)
    y = _gelu_exact(y + bffn1_ref[...])
    y = jnp.dot(y.astype(cdt), w2t_ref[...], preferred_element_type=jnp.float32)
    y = y + b_ffn2

    # residual + norm2
    out = _layernorm(n1 + y, g2, b2, eps)
    out_ref[...] = out.reshape(bblk, S, D).astype(out_ref.dtype)


# ------------------------------ JAX wrappers ---------------------------------

def prepare_params(params, *, num_heads, mxu_dtype=jnp.bfloat16):
    """One-time repack of the PyTorch-layout weights into kernel-friendly layout.
    Hoisted out of the per-call wrapper so transposes/concats are not re-emitted per call.
    mxu_dtype is the precision flag: bf16 (fast MXU path) or f32 (bit-closer parity)."""
    D = params["wq"].shape[0]
    if D % num_heads != 0:
        raise ValueError("d_model must be divisible by num_heads")
    head_size = D // num_heads
    I = params["w_ffn1"].shape[0]
    # Reference passes scale=attention_head_size (scores MULTIPLIED by head_size); fold it
    # into the Q columns of the fused, pre-transposed QKV weight (exact: power-of-2 scale).
    w_qkv_t = jnp.concatenate(
        [params["wq"].T * jnp.float32(head_size), params["wk"].T, params["wv"].T],
        axis=1).astype(mxu_dtype)                               # (D, 3D)
    vecs_d = jnp.concatenate(
        [params["g1"], params["b1"], params["g2"], params["b2"], params["b_ffn2"]],
        axis=0).astype(jnp.float32)                             # (5, D) packed vectors
    return {
        "w_qkv_t": w_qkv_t,
        "w1_t": params["w_ffn1"].T.astype(mxu_dtype),           # (D, I)
        "w2_t": params["w_ffn2"].T.astype(mxu_dtype),           # (I, D)
        "vecs_d": vecs_d,
        "b_ffn1": params["b_ffn1"].astype(jnp.float32),         # (1, I)
        "num_heads": num_heads,
        "head_size": head_size,
        "intermediate_dim": I,
    }


def transformer_encoder_layer(x, prepared, mask=None, *, layer_norm_eps=1e-5):
    """x: (bs, seq_len, d_model). mask: None, (S,S), (1,S,S) or (bs,S,S) additive float mask
    (boolean masks are a no-op, matching the reference). Best layout when d_model, head_size
    and intermediate_dim are multiples of 128 and seq_len is a multiple of 8."""
    bs, S, D = x.shape
    H = prepared["num_heads"]
    hd = prepared["head_size"]
    I = prepared["intermediate_dim"]
    if D != H * hd:
        raise ValueError("x feature dim does not match prepared params")

    # ---- block several batch elements per grid step so QKV/FFN matmuls fill the MXU ----
    target_rows = 256                       # MXU width on v6e/v7x (covers v5e's 128 too)
    bblk = max(1, min(bs, -(-target_rows // S)))
    while bs % bblk != 0:
        bblk -= 1

    # ---- mask handling: never materialize a (bs, S, S) f32 array ----
    mask_mode, mask_arr = "none", None
    if mask is not None:
        mask = jnp.asarray(mask)
        if mask.dtype == jnp.bool_:
            # Reference's masked_fill is out-of-place (result discarded): boolean masks are a
            # no-op there, so they are a no-op here too.
            mask_mode = "none"
        elif mask.ndim == 2:
            mask_mode, mask_arr = "shared", mask.astype(x.dtype)
        elif mask.ndim == 3 and mask.shape[0] == 1:
            mask_mode, mask_arr = "shared", mask[0].astype(x.dtype)
        elif mask.ndim == 3:
            mask_mode = "batch"
            mask_arr = jnp.broadcast_to(mask, (bs, S, S)).astype(x.dtype)
        else:
            raise ValueError("mask must be None, (S,S), (1,S,S) or (bs,S,S)")

    kernel = functools.partial(
        encoder_layer_kernel, num_heads=H, head_size=hd, eps=layer_norm_eps,
        mask_mode=mask_mode, bblk=bblk)

    def const_spec(shape, buffer_count=1):
        # Grid-invariant block; single-buffered when the installed Pallas supports it
        # (double-buffering constant-index blocks only costs VMEM — critical on v7x).
        index_map = lambda b: (0,) * len(shape)
        try:
            return pl.BlockSpec(shape, index_map, pipeline_mode=pl.Buffered(buffer_count))
        except Exception:
            return pl.BlockSpec(shape, index_map)

    in_specs = [pl.BlockSpec((bblk, S, D), lambda b: (b, 0, 0))]       # x
    inputs = [x]
    if mask_mode == "shared":
        in_specs.append(const_spec((S, S)))                            # one shared block
        inputs.append(mask_arr)
    elif mask_mode == "batch":
        in_specs.append(pl.BlockSpec((bblk, S, S), lambda b: (b, 0, 0)))
        inputs.append(mask_arr)
    in_specs += [
        const_spec((D, 3 * D)),     # fused QKV weight (scale folded, pre-transposed)
        const_spec((5, D)),         # packed g1, b1, g2, b2, b_ffn2
        const_spec((1, I)),         # b_ffn1
        const_spec((D, I)),         # W1^T
        const_spec((I, D)),         # W2^T
    ]
    inputs += [prepared["w_qkv_t"], prepared["vecs_d"], prepared["b_ffn1"],
               prepared["w1_t"], prepared["w2_t"]]

    # ---- per-step VMEM footprint estimate -> vmem_limit_bytes with headroom ----
    xb_bytes = bblk * S * D * x.dtype.itemsize
    w_bytes = sum(int(prepared[k].size) * prepared[k].dtype.itemsize
                  for k in ("w_qkv_t", "w1_t", "w2_t"))
    vec_bytes = (8 * D + 8 * I) * 4                    # sublane padding of the small blocks
    mask_bytes = 0
    if mask_mode == "shared":
        mask_bytes = S * S * mask_arr.dtype.itemsize
    elif mask_mode == "batch":
        mask_bytes = 2 * bblk * S * S * mask_arr.dtype.itemsize
    cdt_size = prepared["w_qkv_t"].dtype.itemsize
    live_bytes = (bblk * S * 3 * D * (4 + cdt_size)    # qkv (f32 acc + cdt copy)
                  + 3 * S * S * 4                      # per-head scores / exp
                  + bblk * S * I * 4                   # FFN hidden
                  + 4 * bblk * S * D * 4)              # attn / h1 / n1 / y
    est = 2 * (2 * xb_bytes) + w_bytes + vec_bytes + mask_bytes + live_bytes
    cap = 100 * 1024 * 1024                            # fine on v5e/v6e (128 MiB physical)
    try:                                               # never ask for all of v7x's 64 MiB
        cap = min(cap, int(pltpu.get_tpu_info().vmem_capacity_bytes * 0.85))
    except Exception:
        pass
    vmem_limit = int(min(max(int(est * 1.5), 32 * 1024 * 1024), cap))

    # Advisory cost estimate so XLA schedules surrounding ops around this call.
    flops = bs * (2 * S * D * 3 * D + 4 * S * S * D + 4 * S * D * I)
    transcendentals = bs * (H * S * S + S * I)
    bytes_accessed = int(sum(int(a.size) * a.dtype.itemsize for a in inputs)
                         + bs * S * D * x.dtype.itemsize)

    return pl.pallas_call(
        kernel,
        out_shape=jax.ShapeDtypeStruct((bs, S, D), x.dtype),
        grid_spec=pltpu.PrefetchScalarGridSpec(
            num_scalar_prefetch=0,
            grid=(bs // bblk,),
            in_specs=in_specs,
            out_specs=pl.BlockSpec((bblk, S, D), lambda b: (b, 0, 0)),
        ),
        compiler_params=pltpu.CompilerParams(
            dimension_semantics=("parallel",),
            vmem_limit_bytes=vmem_limit,
        ),
        cost_estimate=pl.CostEstimate(
            flops=flops, transcendentals=transcendentals, bytes_accessed=bytes_accessed),
    )(*inputs)
    # TODO(synk): very long sequences on v7x (64 MiB VMEM/TC) need an S-tiled online-softmax
    # variant (grid (bs, S//tq), K/V resident, LN/FFN per query tile); this whole-layer kernel
    # targets moderate S where the S^2 intermediates fit in VMEM.


# ----------------------------- reference (JAX) ------------------------------

def reference(x, params, mask=None, *, num_heads, eps=1e-5):
    bs, S, D = x.shape
    hd = D // num_heads
    q = x @ params["wq"].T
    k = x @ params["wk"].T
    v = x @ params["wv"].T
    rs = lambda t: t.reshape(bs, S, num_heads, hd).transpose(0, 2, 1, 3)
    q, k, v = rs(q), rs(k), rs(v)
    sims = jnp.einsum("bhqd,bhkd->bhqk", q, k) * float(hd)   # scale = head_size (multiplied)
    if mask is not None:
        sims = sims + mask
    p = jax.nn.softmax(sims, axis=-1)
    attn = jnp.einsum("bhqk,bhkd->bhqd", p, v).transpose(0, 2, 1, 3).reshape(bs, S, D)

    def ln(t, g, b):
        mu = jnp.mean(t, -1, keepdims=True)
        var = jnp.mean((t - mu) ** 2, -1, keepdims=True)
        return (t - mu) * jax.lax.rsqrt(var + eps) * g + b

    h1 = ln(x + attn, params["g1"], params["b1"])
    y = h1 @ params["w_ffn1"].T + params["b_ffn1"]
    y = 0.5 * y * (1.0 + jax.lax.erf(y / math.sqrt(2.0)))
    y = y @ params["w_ffn2"].T + params["b_ffn2"]
    return ln(h1 + y, params["g2"], params["b2"])


# ---------------------------------- main ------------------------------------

if __name__ == "__main__":
    # Small but TPU-friendly shapes: head_size = 256 / 2 = 128 (lane-aligned), I mult. of 128.
    bs, S, D, H, I = 2, 8, 256, 2, 512

    key = jax.random.PRNGKey(0)
    ks = jax.random.split(key, 8)
    params = {
        "wq": jax.random.normal(ks[0], (D, D), jnp.float32) * 0.005,
        "wk": jax.random.normal(ks[1], (D, D), jnp.float32) * 0.005,
        "wv": jax.random.normal(ks[2], (D, D), jnp.float32) * 0.005,
        "g1": jnp.ones((1, D), jnp.float32),
        "b1": jnp.zeros((1, D), jnp.float32),
        "w_ffn1": jax.random.normal(ks[3], (I, D), jnp.float32) * 0.05,
        "b_ffn1": jax.random.normal(ks[4], (1, I), jnp.float32) * 0.1,
        "w_ffn2": jax.random.normal(ks[5], (D, I), jnp.float32) * 0.05,
        "b_ffn2": jax.random.normal(ks[6], (1, D), jnp.float32) * 0.1,
        "g2": jnp.ones((1, D), jnp.float32),
        "b2": jnp.zeros((1, D), jnp.float32),
    }
    x = jax.random.normal(ks[7], (bs, S, D), jnp.float32)

    with jax.default_matmul_precision("highest"):
        ref_nomask = reference(x, params, None, num_heads=H)

    # --- default path: bf16 MXU operands (f32 accumulation), no mask ---
    prep_bf16 = prepare_params(params, num_heads=H, mxu_dtype=jnp.bfloat16)
    out = jax.block_until_ready(transformer_encoder_layer(x, prep_bf16, None))
    assert out.shape == (bs, S, D)
    assert jnp.allclose(out, ref_nomask, atol=3e-2, rtol=3e-2), \
        "mismatch vs JAX reference (bf16 MXU, no mask)"

    # --- precision path: f32 MXU operands + batch-invariant (S, S) additive causal mask ---
    causal = jnp.tril(jnp.ones((S, S), jnp.float32))
    add_mask = jnp.where(causal == 1.0, 0.0, -1e9).astype(jnp.float32)   # (S, S), NOT (bs,S,S)
    prep_f32 = prepare_params(params, num_heads=H, mxu_dtype=jnp.float32)
    out_m = jax.block_until_ready(transformer_encoder_layer(x, prep_f32, add_mask))
    with jax.default_matmul_precision("highest"):
        ref_mask = reference(x, params, add_mask, num_heads=H)
    assert jnp.allclose(out_m, ref_mask, atol=3e-3, rtol=3e-3), \
        "mismatch vs JAX reference (f32 MXU, mask)"

    # Boolean masks are a no-op in the reference (out-of-place masked_fill) -> no-op here too.
    out_b = jax.block_until_ready(
        transformer_encoder_layer(x, prep_bf16, causal.astype(bool)))
    assert jnp.allclose(out_b, out, atol=1e-6, rtol=1e-6), "boolean mask should be a no-op"

    print("KERNEL_OK")
</pallas_src>

<mosaic_0001>
module attributes {stable_mosaic.version = 11 : i64} {
  func.func @encoder_layer_kernel(%arg0: i32, %arg1: memref<2x8x256xf32, #tpu.memory_space<vmem>>, %arg2: memref<256x768xbf16, #tpu.memory_space<vmem>>, %arg3: memref<5x256xf32, #tpu.memory_space<vmem>>, %arg4: memref<1x512xf32, #tpu.memory_space<vmem>>, %arg5: memref<256x512xbf16, #tpu.memory_space<vmem>>, %arg6: memref<512x256xbf16, #tpu.memory_space<vmem>>, %arg7: memref<2x8x256xf32, #tpu.memory_space<vmem>>) attributes {dimension_semantics = [#tpu.dimension_semantics<parallel>], iteration_bounds = array<i64: 1>, scalar_prefetch = 0 : i64, scratch_operands = 0 : i64, tpu.core_type = #tpu.core_type<tc>, window_params = [{transform_indices = @transform_0, window_bounds = array<i64: 2, 8, 256>}, {pipeline_mode = #tpu.pipeline_mode<synchronous>, transform_indices = @transform_1, window_bounds = array<i64: 256, 768>}, {pipeline_mode = #tpu.pipeline_mode<synchronous>, transform_indices = @transform_2, window_bounds = array<i64: 5, 256>}, {pipeline_mode = #tpu.pipeline_mode<synchronous>, transform_indices = @transform_3, window_bounds = array<i64: 1, 512>}, {pipeline_mode = #tpu.pipeline_mode<synchronous>, transform_indices = @transform_4, window_bounds = array<i64: 256, 512>}, {pipeline_mode = #tpu.pipeline_mode<synchronous>, transform_indices = @transform_5, window_bounds = array<i64: 512, 256>}, {transform_indices = @transform_6, window_bounds = array<i64: 2, 8, 256>}]} {
    %c0 = arith.constant 0 : index
    %c0_0 = arith.constant 0 : index
    %c0_1 = arith.constant 0 : index
    %0 = vector.load %arg1[%c0, %c0_0, %c0_1] : memref<2x8x256xf32, #tpu.memory_space<vmem>>, vector<2x8x256xf32>
    %1 = vector.shape_cast %0 : vector<2x8x256xf32> to vector<16x256xf32>
    %2 = arith.truncf %1 : vector<16x256xf32> to vector<16x256xbf16>
    %c0_2 = arith.constant 0 : index
    %c0_3 = arith.constant 0 : index
    %3 = vector.load %arg2[%c0_2, %c0_3] : memref<256x768xbf16, #tpu.memory_space<vmem>>, vector<256x768xbf16>
    %cst = arith.constant dense<0.000000e+00> : vector<16x768xf32>
    %4 = tpu.matmul %2, %3, %cst {dimension_numbers = #tpu.dot_dimension_numbers<[1], [0], [0], [1], [0, 0, 1, 1], [], []>} : vector<16x256xbf16>, vector<256x768xbf16>, vector<16x768xf32> -> vector<16x768xf32>
    %5 = arith.truncf %4 : vector<16x768xf32> to vector<16x768xbf16>
    %6 = vector.extract_strided_slice %5 {offsets = [0, 0], sizes = [8, 128], strides = [1, 1]} : vector<16x768xbf16> to vector<8x128xbf16>
    %7 = vector.extract_strided_slice %5 {offsets = [0, 256], sizes = [8, 128], strides = [1, 1]} : vector<16x768xbf16> to vector<8x128xbf16>
    %8 = vector.extract_strided_slice %5 {offsets = [0, 512], sizes = [8, 128], strides = [1, 1]} : vector<16x768xbf16> to vector<8x128xbf16>
    "tpu.trace_start"() <{level = 10 : i32, message = "qd,kd->qk"}> : () -> ()
    %cst_4 = arith.constant dense<0.000000e+00> : vector<8x8xf32>
    %9 = tpu.matmul %6, %7, %cst_4 {dimension_numbers = #tpu.dot_dimension_numbers<[1], [1], [0], [0], [0, 0, 1, 0], [], []>} : vector<8x128xbf16>, vector<8x128xbf16>, vector<8x8xf32> -> vector<8x8xf32>
    "tpu.trace_stop"() : () -> ()
    %cst_5 = arith.constant dense<0xFF800000> : vector<8xf32>
    %10 = vector.multi_reduction <maximumf>, %9, %cst_5 [1] : vector<8x8xf32> to vector<8xf32>
    %11 = vector.shape_cast %10 : vector<8xf32> to vector<8x1xf32>
    %12 = vector.broadcast %11 : vector<8x1xf32> to vector<8x8xf32>
    %13 = arith.subf %9, %12 : vector<8x8xf32>
    %14 = math.exp %13 : vector<8x8xf32>
    %cst_6 = arith.constant dense<0.000000e+00> : vector<8xf32>
    %15 = vector.multi_reduction <add>, %14, %cst_6 [1] : vector<8x8xf32> to vector<8xf32>
    %16 = vector.shape_cast %15 : vector<8xf32> to vector<8x1xf32>
    %17 = arith.truncf %14 : vector<8x8xf32> to vector<8x8xbf16>
    %cst_7 = arith.constant dense<0.000000e+00> : vector<8x128xf32>
    %18 = tpu.matmul %17, %8, %cst_7 {dimension_numbers = #tpu.dot_dimension_numbers<[1], [0], [0], [1], [0, 0, 1, 1], [], []>} : vector<8x8xbf16>, vector<8x128xbf16>, vector<8x128xf32> -> vector<8x128xf32>
    %19 = tpu.reciprocal %16 {approx = true} : vector<8x1xf32> -> vector<8x1xf32>
    %20 = vector.broadcast %19 : vector<8x1xf32> to vector<8x128xf32>
    %21 = arith.mulf %18, %20 : vector<8x128xf32>
    %22 = vector.extract_strided_slice %5 {offsets = [0, 128], sizes = [8, 128], strides = [1, 1]} : vector<16x768xbf16> to vector<8x128xbf16>
    %23 = vector.extract_strided_slice %5 {offsets = [0, 384], sizes = [8, 128], strides = [1, 1]} : vector<16x768xbf16> to vector<8x128xbf16>
    %24 = vector.extract_strided_slice %5 {offsets = [0, 640], sizes = [8, 128], strides = [1, 1]} : vector<16x768xbf16> to vector<8x128xbf16>
    "tpu.trace_start"() <{level = 10 : i32, message = "qd,kd->qk"}> : () -> ()
    %cst_8 = arith.constant dense<0.000000e+00> : vector<8x8xf32>
    %25 = tpu.matmul %22, %23, %cst_8 {dimension_numbers = #tpu.dot_dimension_numbers<[1], [1], [0], [0], [0, 0, 1, 0], [], []>} : vector<8x128xbf16>, vector<8x128xbf16>, vector<8x8xf32> -> vector<8x8xf32>
    "tpu.trace_stop"() : () -> ()
    %cst_9 = arith.constant dense<0xFF800000> : vector<8xf32>
    %26 = vector.multi_reduction <maximumf>, %25, %cst_9 [1] : vector<8x8xf32> to vector<8xf32>
    %27 = vector.shape_cast %26 : vector<8xf32> to vector<8x1xf32>
    %28 = vector.broadcast %27 : vector<8x1xf32> to vector<8x8xf32>
    %29 = arith.subf %25, %28 : vector<8x8xf32>
    %30 = math.exp %29 : vector<8x8xf32>
    %cst_10 = arith.constant dense<0.000000e+00> : vector<8xf32>
    %31 = vector.multi_reduction <add>, %30, %cst_10 [1] : vector<8x8xf32> to vector<8xf32>
    %32 = vector.shape_cast %31 : vector<8xf32> to vector<8x1xf32>
    %33 = arith.truncf %30 : vector<8x8xf32> to vector<8x8xbf16>
    %cst_11 = arith.constant dense<0.000000e+00> : vector<8x128xf32>
    %34 = tpu.matmul %33, %24, %cst_11 {dimension_numbers = #tpu.dot_dimension_numbers<[1], [0], [0], [1], [0, 0, 1, 1], [], []>} : vector<8x8xbf16>, vector<8x128xbf16>, vector<8x128xf32> -> vector<8x128xf32>
    %35 = tpu.reciprocal %32 {approx = true} : vector<8x1xf32> -> vector<8x1xf32>
    %36 = vector.broadcast %35 : vector<8x1xf32> to vector<8x128xf32>
    %37 = arith.mulf %34, %36 : vector<8x128xf32>
    %38 = tpu.concatenate %21, %37 in 1 : vector<8x128xf32>, vector<8x128xf32> -> vector<8x256xf32>
    %39 = vector.extract_strided_slice %5 {offsets = [8, 0], sizes = [8, 128], strides = [1, 1]} : vector<16x768xbf16> to vector<8x128xbf16>
    %40 = vector.extract_strided_slice %5 {offsets = [8, 256], sizes = [8, 128], strides = [1, 1]} : vector<16x768xbf16> to vector<8x128xbf16>
    %41 = vector.extract_strided_slice %5 {offsets = [8, 512], sizes = [8, 128], strides = [1, 1]} : vector<16x768xbf16> to vector<8x128xbf16>
    "tpu.trace_start"() <{level = 10 : i32, message = "qd,kd->qk"}> : () -> ()
    %cst_12 = arith.constant dense<0.000000e+00> : vector<8x8xf32>
    %42 = tpu.matmul %39, %40, %cst_12 {dimension_numbers = #tpu.dot_dimension_numbers<[1], [1], [0], [0], [0, 0, 1, 0], [], []>} : vector<8x128xbf16>, vector<8x128xbf16>, vector<8x8xf32> -> vector<8x8xf32>
    "tpu.trace_stop"() : () -> ()
    %cst_13 = arith.constant dense<0xFF800000> : vector<8xf32>
    %43 = vector.multi_reduction <maximumf>, %42, %cst_13 [1] : vector<8x8xf32> to vector<8xf32>
    %44 = vector.shape_cast %43 : vector<8xf32> to vector<8x1xf32>
    %45 = vector.broadcast %44 : vector<8x1xf32> to vector<8x8xf32>
    %46 = arith.subf %42, %45 : vector<8x8xf32>
    %47 = math.exp %46 : vector<8x8xf32>
    %cst_14 = arith.constant dense<0.000000e+00> : vector<8xf32>
    %48 = vector.multi_reduction <add>, %47, %cst_14 [1] : vector<8x8xf32> to vector<8xf32>
    %49 = vector.shape_cast %48 : vector<8xf32> to vector<8x1xf32>
    %50 = arith.truncf %47 : vector<8x8xf32> to vector<8x8xbf16>
    %cst_15 = arith.constant dense<0.000000e+00> : vector<8x128xf32>
    %51 = tpu.matmul %50, %41, %cst_15 {dimension_numbers = #tpu.dot_dimension_numbers<[1], [0], [0], [1], [0, 0, 1, 1], [], []>} : vector<8x8xbf16>, vector<8x128xbf16>, vector<8x128xf32> -> vector<8x128xf32>
    %52 = tpu.reciprocal %49 {approx = true} : vector<8x1xf32> -> vector<8x1xf32>
    %53 = vector.broadcast %52 : vector<8x1xf32> to vector<8x128xf32>
    %54 = arith.mulf %51, %53 : vector<8x128xf32>
    %55 = vector.extract_strided_slice %5 {offsets = [8, 128], sizes = [8, 128], strides = [1, 1]} : vector<16x768xbf16> to vector<8x128xbf16>
    %56 = vector.extract_strided_slice %5 {offsets = [8, 384], sizes = [8, 128], strides = [1, 1]} : vector<16x768xbf16> to vector<8x128xbf16>
    %57 = vector.extract_strided_slice %5 {offsets = [8, 640], sizes = [8, 128], strides = [1, 1]} : vector<16x768xbf16> to vector<8x128xbf16>
    "tpu.trace_start"() <{level = 10 : i32, message = "qd,kd->qk"}> : () -> ()
    %cst_16 = arith.constant dense<0.000000e+00> : vector<8x8xf32>
    %58 = tpu.matmul %55, %56, %cst_16 {dimension_numbers = #tpu.dot_dimension_numbers<[1], [1], [0], [0], [0, 0, 1, 0], [], []>} : vector<8x128xbf16>, vector<8x128xbf16>, vector<8x8xf32> -> vector<8x8xf32>
    "tpu.trace_stop"() : () -> ()
    %cst_17 = arith.constant dense<0xFF800000> : vector<8xf32>
    %59 = vector.multi_reduction <maximumf>, %58, %cst_17 [1] : vector<8x8xf32> to vector<8xf32>
    %60 = vector.shape_cast %59 : vector<8xf32> to vector<8x1xf32>
    %61 = vector.broadcast %60 : vector<8x1xf32> to vector<8x8xf32>
    %62 = arith.subf %58, %61 : vector<8x8xf32>
    %63 = math.exp %62 : vector<8x8xf32>
    %cst_18 = arith.constant dense<0.000000e+00> : vector<8xf32>
    %64 = vector.multi_reduction <add>, %63, %cst_18 [1] : vector<8x8xf32> to vector<8xf32>
    %65 = vector.shape_cast %64 : vector<8xf32> to vector<8x1xf32>
    %66 = arith.truncf %63 : vector<8x8xf32> to vector<8x8xbf16>
    %cst_19 = arith.constant dense<0.000000e+00> : vector<8x128xf32>
    %67 = tpu.matmul %66, %57, %cst_19 {dimension_numbers = #tpu.dot_dimension_numbers<[1], [0], [0], [1], [0, 0, 1, 1], [], []>} : vector<8x8xbf16>, vector<8x128xbf16>, vector<8x128xf32> -> vector<8x128xf32>
    %68 = tpu.reciprocal %65 {approx = true} : vector<8x1xf32> -> vector<8x1xf32>
    %69 = vector.broadcast %68 : vector<8x1xf32> to vector<8x128xf32>
    %70 = arith.mulf %67, %69 : vector<8x128xf32>
    %71 = tpu.concatenate %54, %70 in 1 : vector<8x128xf32>, vector<8x128xf32> -> vector<8x256xf32>
    %72 = tpu.concatenate %38, %71 in 0 : vector<8x256xf32>, vector<8x256xf32> -> vector<16x256xf32>
    %c0_20 = arith.constant 0 : index
    %c0_21 = arith.constant 0 : index
    %73 = vector.load %arg3[%c0_20, %c0_21] : memref<5x256xf32, #tpu.memory_space<vmem>>, vector<5x256xf32>
    %74 = vector.extract_strided_slice %73 {offsets = [0, 0], sizes = [1, 256], strides = [1, 1]} : vector<5x256xf32> to vector<1x256xf32>
    %75 = vector.extract_strided_slice %73 {offsets = [1, 0], sizes = [1, 256], strides = [1, 1]} : vector<5x256xf32> to vector<1x256xf32>
    %76 = vector.extract_strided_slice %73 {offsets = [2, 0], sizes = [1, 256], strides = [1, 1]} : vector<5x256xf32> to vector<1x256xf32>
    %77 = vector.extract_strided_slice %73 {offsets = [3, 0], sizes = [1, 256], strides = [1, 1]} : vector<5x256xf32> to vector<1x256xf32>
    %78 = vector.extract_strided_slice %73 {offsets = [4, 0], sizes = [1, 256], strides = [1, 1]} : vector<5x256xf32> to vector<1x256xf32>
    %79 = arith.addf %1, %72 : vector<16x256xf32>
    %cst_22 = arith.constant dense<0.000000e+00> : vector<16xf32>
    %80 = vector.multi_reduction <add>, %79, %cst_22 [1] : vector<16x256xf32> to vector<16xf32>
    %81 = vector.shape_cast %80 : vector<16xf32> to vector<16x1xf32>
    %cst_23 = arith.constant 2.560000e+02 : f32
    %82 = vector.broadcast %cst_23 : f32 to vector<16x1xf32>
    %83 = arith.divf %81, %82 : vector<16x1xf32>
    %84 = vector.broadcast %83 : vector<16x1xf32> to vector<16x256xf32>
    %85 = arith.subf %79, %84 : vector<16x256xf32>
    %86 = arith.mulf %85, %85 : vector<16x256xf32>
    %cst_24 = arith.constant dense<0.000000e+00> : vector<16xf32>
    %87 = vector.multi_reduction <add>, %86, %cst_24 [1] : vector<16x256xf32> to vector<16xf32>
    %88 = vector.shape_cast %87 : vector<16xf32> to vector<16x1xf32>
    %cst_25 = arith.constant 2.560000e+02 : f32
    %89 = vector.broadcast %cst_25 : f32 to vector<16x1xf32>
    %90 = arith.divf %88, %89 : vector<16x1xf32>
    %91 = vector.broadcast %83 : vector<16x1xf32> to vector<16x256xf32>
    %92 = arith.subf %79, %91 : vector<16x256xf32>
    %cst_26 = arith.constant 9.99999974E-6 : f32
    %93 = vector.broadcast %cst_26 : f32 to vector<16x1xf32>
    %94 = arith.addf %90, %93 : vector<16x1xf32>
    %95 = math.rsqrt %94 : vector<16x1xf32>
    %96 = vector.broadcast %95 : vector<16x1xf32> to vector<16x256xf32>
    %97 = arith.mulf %92, %96 : vector<16x256xf32>
    %98 = vector.broadcast %74 : vector<1x256xf32> to vector<16x256xf32>
    %99 = arith.mulf %97, %98 : vector<16x256xf32>
    %100 = vector.broadcast %75 : vector<1x256xf32> to vector<16x256xf32>
    %101 = arith.addf %99, %100 : vector<16x256xf32>
    %102 = arith.truncf %101 : vector<16x256xf32> to vector<16x256xbf16>
    %c0_27 = arith.constant 0 : index
    %c0_28 = arith.constant 0 : index
    %103 = vector.load %arg5[%c0_27, %c0_28] : memref<256x512xbf16, #tpu.memory_space<vmem>>, vector<256x512xbf16>
    %cst_29 = arith.constant dense<0.000000e+00> : vector<16x512xf32>
    %104 = tpu.matmul %102, %103, %cst_29 {dimension_numbers = #tpu.dot_dimension_numbers<[1], [0], [0], [1], [0, 0, 1, 1], [], []>} : vector<16x256xbf16>, vector<256x512xbf16>, vector<16x512xf32> -> vector<16x512xf32>
    %c0_30 = arith.constant 0 : index
    %c0_31 = arith.constant 0 : index
    %105 = vector.load %arg4[%c0_30, %c0_31] : memref<1x512xf32, #tpu.memory_space<vmem>>, vector<1x512xf32>
    %106 = vector.broadcast %105 : vector<1x512xf32> to vector<16x512xf32>
    %107 = arith.addf %104, %106 : vector<16x512xf32>
    %cst_32 = arith.constant 5.000000e-01 : f32
    %108 = vector.broadcast %cst_32 : f32 to vector<16x512xf32>
    %109 = arith.mulf %108, %107 : vector<16x512xf32>
    %cst_33 = arith.constant 0.707106769 : f32
    %110 = vector.broadcast %cst_33 : f32 to vector<16x512xf32>
    %111 = arith.mulf %107, %110 : vector<16x512xf32>
    %112 = math.erf %111 : vector<16x512xf32>
    %cst_34 = arith.constant 1.000000e+00 : f32
    %113 = vector.broadcast %cst_34 : f32 to vector<16x512xf32>
    %114 = arith.addf %113, %112 : vector<16x512xf32>
    %115 = arith.mulf %109, %114 : vector<16x512xf32>
    %116 = arith.truncf %115 : vector<16x512xf32> to vector<16x512xbf16>
    %c0_35 = arith.constant 0 : index
    %c0_36 = arith.constant 0 : index
    %117 = vector.load %arg6[%c0_35, %c0_36] : memref<512x256xbf16, #tpu.memory_space<vmem>>, vector<512x256xbf16>
    %cst_37 = arith.constant dense<0.000000e+00> : vector<16x256xf32>
    %118 = tpu.matmul %116, %117, %cst_37 {dimension_numbers = #tpu.dot_dimension_numbers<[1], [0], [0], [1], [0, 0, 1, 1], [], []>} : vector<16x512xbf16>, vector<512x256xbf16>, vector<16x256xf32> -> vector<16x256xf32>
    %119 = vector.broadcast %78 : vector<1x256xf32> to vector<16x256xf32>
    %120 = arith.addf %118, %119 : vector<16x256xf32>
    %121 = arith.addf %101, %120 : vector<16x256xf32>
    %cst_38 = arith.constant dense<0.000000e+00> : vector<16xf32>
    %122 = vector.multi_reduction <add>, %121, %cst_38 [1] : vector<16x256xf32> to vector<16xf32>
    %123 = vector.shape_cast %122 : vector<16xf32> to vector<16x1xf32>
    %cst_39 = arith.constant 2.560000e+02 : f32
    %124 = vector.broadcast %cst_39 : f32 to vector<16x1xf32>
    %125 = arith.divf %123, %124 : vector<16x1xf32>
    %126 = vector.broadcast %125 : vector<16x1xf32> to vector<16x256xf32>
    %127 = arith.subf %121, %126 : vector<16x256xf32>
    %128 = arith.mulf %127, %127 : vector<16x256xf32>
    %cst_40 = arith.constant dense<0.000000e+00> : vector<16xf32>
    %129 = vector.multi_reduction <add>, %128, %cst_40 [1] : vector<16x256xf32> to vector<16xf32>
    %130 = vector.shape_cast %129 : vector<16xf32> to vector<16x1xf32>
    %cst_41 = arith.constant 2.560000e+02 : f32
    %131 = vector.broadcast %cst_41 : f32 to vector<16x1xf32>
    %132 = arith.divf %130, %131 : vector<16x1xf32>
    %133 = vector.broadcast %125 : vector<16x1xf32> to vector<16x256xf32>
    %134 = arith.subf %121, %133 : vector<16x256xf32>
    %cst_42 = arith.constant 9.99999974E-6 : f32
    %135 = vector.broadcast %cst_42 : f32 to vector<16x1xf32>
    %136 = arith.addf %132, %135 : vector<16x1xf32>
    %137 = math.rsqrt %136 : vector<16x1xf32>
    %138 = vector.broadcast %137 : vector<16x1xf32> to vector<16x256xf32>
    %139 = arith.mulf %134, %138 : vector<16x256xf32>
    %140 = vector.broadcast %76 : vector<1x256xf32> to vector<16x256xf32>
    %141 = arith.mulf %139, %140 : vector<16x256xf32>
    %142 = vector.broadcast %77 : vector<1x256xf32> to vector<16x256xf32>
    %143 = arith.addf %141, %142 : vector<16x256xf32>
    %144 = vector.shape_cast %143 : vector<16x256xf32> to vector<2x8x256xf32>
    %c0_43 = arith.constant 0 : index
    %c0_44 = arith.constant 0 : index
    %c0_45 = arith.constant 0 : index
    %145 = vector.load %arg7[%c0_43, %c0_44, %c0_45] : memref<2x8x256xf32, #tpu.memory_space<vmem>>, vector<2x8x256xf32>
    tpu.vector_store %arg7[%c0_43, %c0_44, %c0_45], %144 {strides = array<i32>} : memref<2x8x256xf32, #tpu.memory_space<vmem>>, vector<2x8x256xf32>,
    return
  }
  func.func @transform_0(%arg0: i32) -> (i32, i32, i32) {
    %c0_i32 = arith.constant 0 : i32
    %c0_i32_0 = arith.constant 0 : i32
    %c0_i32_1 = arith.constant 0 : i32
    return %arg0, %c0_i32, %c0_i32_0 : i32, i32, i32
  }
  func.func @transform_1(%arg0: i32) -> (i32, i32) {
    %c0_i32 = arith.constant 0 : i32
    %c0_i32_0 = arith.constant 0 : i32
    %c0_i32_1 = arith.constant 0 : i32
    return %c0_i32, %c0_i32_0 : i32, i32
  }
  func.func @transform_2(%arg0: i32) -> (i32, i32) {
    %c0_i32 = arith.constant 0 : i32
    %c0_i32_0 = arith.constant 0 : i32
    %c0_i32_1 = arith.constant 0 : i32
    return %c0_i32, %c0_i32_0 : i32, i32
  }
  func.func @transform_3(%arg0: i32) -> (i32, i32) {
    %c0_i32 = arith.constant 0 : i32
    %c0_i32_0 = arith.constant 0 : i32
    %c0_i32_1 = arith.constant 0 : i32
    return %c0_i32, %c0_i32_0 : i32, i32
  }
  func.func @transform_4(%arg0: i32) -> (i32, i32) {
    %c0_i32 = arith.constant 0 : i32
    %c0_i32_0 = arith.constant 0 : i32
    %c0_i32_1 = arith.constant 0 : i32
    return %c0_i32, %c0_i32_0 : i32, i32
  }
  func.func @transform_5(%arg0: i32) -> (i32, i32) {
    %c0_i32 = arith.constant 0 : i32
    %c0_i32_0 = arith.constant 0 : i32
    %c0_i32_1 = arith.constant 0 : i32
    return %c0_i32, %c0_i32_0 : i32, i32
  }
  func.func @transform_6(%arg0: i32) -> (i32, i32, i32) {
    %c0_i32 = arith.constant 0 : i32
    %c0_i32_0 = arith.constant 0 : i32
    %c0_i32_1 = arith.constant 0 : i32
    return %arg0, %c0_i32, %c0_i32_0 : i32, i32, i32
  }
}

</mosaic_0001>

<llo_original>
// kernel: tpu_custom_call.1
$region0: #{tpu_custom_call.1}
  #allocation0 [shape = 'u32[]', space=smem, size = 0x4, offset = 0x4, fixed_abs, tag = 'smem constant byte address 0x4 - core index']
  #allocation1 [shape = 'u32[144,128]{1,0:T(1,128)}', space=vmem, size = 0x12000, scoped, tag = 'internal scratch']
  %s0 = inlined_call_operand.hbm [shape: f32[2,8,256], index: 0, kind: input, shape index: {}]
  %s1 = inlined_call_operand.hbm [shape: bf16[256,768], index: 1, kind: input, shape index: {}]
  %s2 = inlined_call_operand.hbm [shape: f32[5,256], index: 2, kind: input, shape index: {}]
  %s3 = inlined_call_operand.vmem [shape: f32[1,512], index: 3, kind: input, shape index: {}]
  %s4 = inlined_call_operand.hbm [shape: bf16[256,512], index: 4, kind: input, shape index: {}]
  %s5 = inlined_call_operand.hbm [shape: bf16[512,256], index: 5, kind: input, shape index: {}]
  %s6 = inlined_call_operand.hbm [shape: f32[2,8,256], index: 6, kind: output, shape index: {}]
  %s7 = sld [smem:[#allocation0]]
  $region54: #{tpu_custom_call.1} parent=0
    _
  %s9 = ssub.s32 1, %s7
  %s10 = scalar_select 0, %s9, %s7
  $region1: #{tpu_custom_call.1} parent=0
    #allocation2 [shape = 'u8[16384]{0}', space=vmem, size = 0x4000, scoped, tag = 'input window, operand 0, single buffered']
    #allocation3 [shape = 's32[1]{0}', space=sflag, size = 0x4, scoped, tag = 'scoped memory for tpu_custom_call.1']
    #allocation4 [shape = 's32[1]{0}', space=sflag, size = 0x4, scoped, tag = 'scoped memory for tpu_custom_call.1']
    #allocation5 [shape = 'u8[393216]{0}', space=vmem, size = 0x60000, scoped, tag = 'input window, operand 1, single buffered']
    #allocation6 [shape = 's32[1]{0}', space=sflag, size = 0x4, scoped, tag = 'scoped memory for tpu_custom_call.1']
    #allocation7 [shape = 'u8[8192]{0}', space=vmem, size = 0x2000, scoped, tag = 'input window, operand 2, single buffered']
    #allocation8 [shape = 'u8[262144]{0}', space=vmem, size = 0x40000, scoped, tag = 'input window, operand 4, single buffered']
    #allocation9 [shape = 's32[1]{0}', space=sflag, size = 0x4, scoped, tag = 'scoped memory for tpu_custom_call.1']
    #allocation10 [shape = 'u8[262144]{0}', space=vmem, size = 0x40000, scoped, tag = 'input window, operand 5, single buffered']
    #allocation11 [shape = 'u8[16384]{0}', space=vmem, size = 0x4000, scoped, tag = 'output window, operand 0, single buffered']
    %11 = vsyncpa [#allocation3], 0
    %12 = vsyncpa [#allocation6], 0
    %13 = vsyncpa [#allocation9], 0
    %14 = vsyncpa [#allocation4], 0
    // Predicated region
    $region2: #{tpu_custom_call.1} parent=1 // pred_check
      _
    $region3: #{tpu_custom_call.1} parent=1 // pred_check_branch
      %16 = sbr.rel (0) target = $region5
    $region4: #{tpu_custom_call.1} parent=1 // pred_region
      %s18 = ssub.s32 512, 512
      %19 = vsyncadd [#allocation3], %s18
      %s20 = sshll.u32 [#allocation2], 4
      %s21 = int_to_ptr.vmem [resolvable:$true] %s20
      %26 = dma.hbm_to_vmem [thread:$0]  %s0, 512, %s21, [#allocation3], 256, 256, 16
    $region5: #{tpu_custom_call.1} parent=1 // pred_fallthru
      _
    // Predicated region
    $region6: #{tpu_custom_call.1} parent=1 // pred_check
      _
    $region7: #{tpu_custom_call.1} parent=1 // pred_check_branch
      %28 = sbr.rel (0) target = $region9
    $region8: #{tpu_custom_call.1} parent=1 // pred_region
      %s30 = ssub.s32 12288, 12288
      %31 = vsyncadd [#allocation6], %s30
      %s32 = sshll.u32 [#allocation5], 4
      %s33 = int_to_ptr.vmem [resolvable:$true] %s32
      %38 = dma.hbm_to_vmem [thread:$0]  %s1, 12288, %s33, [#allocation6], 384, 384, 24
    $region9: #{tpu_custom_call.1} parent=1 // pred_fallthru
      _
    // Predicated region
    $region10: #{tpu_custom_call.1} parent=1 // pred_check
      _
    $region11: #{tpu_custom_call.1} parent=1 // pred_check_branch
      %40 = sbr.rel (0) target = $region13
    $region12: #{tpu_custom_call.1} parent=1 // pred_region
      %s42 = ssub.s32 256, 256
      %43 = vsyncadd [#allocation6], %s42
      %s45 = sshll.u32 [#allocation7], 4
      %s46 = int_to_ptr.vmem [resolvable:$true] %s45
      %48 = dma.hbm_to_vmem [thread:$0]  %s2, 256, %s46, [#allocation6]
    $region13: #{tpu_custom_call.1} parent=1 // pred_fallthru
      _
    // Predicated region
    $region14: #{tpu_custom_call.1} parent=1 // pred_check
      _
    $region15: #{tpu_custom_call.1} parent=1 // pred_check_branch
      %50 = sbr.rel (0) target = $region17
    $region16: #{tpu_custom_call.1} parent=1 // pred_region
      _
    $region17: #{tpu_custom_call.1} parent=1 // pred_fallthru
      _
    // Predicated region
    $region18: #{tpu_custom_call.1} parent=1 // pred_check
      _
    $region19: #{tpu_custom_call.1} parent=1 // pred_check_branch
      %52 = sbr.rel (0) target = $region21
    $region20: #{tpu_custom_call.1} parent=1 // pred_region
      %s54 = ssub.s32 8192, 8192
      %55 = vsyncadd [#allocation9], %s54
      %s56 = sshll.u32 [#allocation8], 4
      %s57 = int_to_ptr.vmem [resolvable:$true] %s56
      %62 = dma.hbm_to_vmem [thread:$0]  %s4, 8192, %s57, [#allocation9], 256, 256, 16
    $region21: #{tpu_custom_call.1} parent=1 // pred_fallthru
      _
    // Predicated region
    $region22: #{tpu_custom_call.1} parent=1 // pred_check
      _
    $region23: #{tpu_custom_call.1} parent=1 // pred_check_branch
      %64 = sbr.rel (0) target = $region25
    $region24: #{tpu_custom_call.1} parent=1 // pred_region
      %s66 = ssub.s32 8192, 8192
      %67 = vsyncadd [#allocation9], %s66
      %s68 = sshll.u32 [#allocation10], 4
      %s69 = int_to_ptr.vmem [resolvable:$true] %s68
      %74 = dma.hbm_to_vmem [thread:$0]  %s5, 8192, %s69, [#allocation9], 128, 128, 8
    $region25: #{tpu_custom_call.1} parent=1 // pred_fallthru
      _
    // Predicated region
    $region26: #{tpu_custom_call.1} parent=1 // pred_check
      _
    $region27: #{tpu_custom_call.1} parent=1 // pred_check_branch
      %76 = sbr.rel (0) target = $region29
    $region28: #{tpu_custom_call.1} parent=1 // pred_region
      %77 = dma.done [#allocation3], 512
    $region29: #{tpu_custom_call.1} parent=1 // pred_fallthru
      _
    // Predicated region
    $region30: #{tpu_custom_call.1} parent=1 // pred_check
      _
    $region31: #{tpu_custom_call.1} parent=1 // pred_check_branch
      %79 = sbr.rel (0) target = $region33
    $region32: #{tpu_custom_call.1} parent=1 // pred_region
      %80 = dma.done [#allocation6], 12288
    $region33: #{tpu_custom_call.1} parent=1 // pred_fallthru
      _
    // Predicated region
    $region34: #{tpu_custom_call.1} parent=1 // pred_check
      _
    $region35: #{tpu_custom_call.1} parent=1 // pred_check_branch
      %82 = sbr.rel (0) target = $region37
    $region36: #{tpu_custom_call.1} parent=1 // pred_region
      %83 = dma.done [#allocation6], 256
    $region37: #{tpu_custom_call.1} parent=1 // pred_fallthru
      _
    // Predicated region
    $region38: #{tpu_custom_call.1} parent=1 // pred_check
      _
    $region39: #{tpu_custom_call.1} parent=1 // pred_check_branch
      %85 = sbr.rel (0) target = $region41
    $region40: #{tpu_custom_call.1} parent=1 // pred_region
      %86 = dma.done [#allocation9], 8192
    $region41: #{tpu_custom_call.1} parent=1 // pred_fallthru
      _
    // Predicated region
    $region42: #{tpu_custom_call.1} parent=1 // pred_check
      _
    $region43: #{tpu_custom_call.1} parent=1 // pred_check_branch
      %88 = sbr.rel (0) target = $region45
    $region44: #{tpu_custom_call.1} parent=1 // pred_region
      %89 = dma.done [#allocation9], 8192
    $region45: #{tpu_custom_call.1} parent=1 // pred_fallthru
      _
    %v91 = vld [vmem:[#allocation2] sm:$0xff]
    %v92 = vld [vmem:[#allocation2 + $0x8] sm:$0xff]
    %v93 = vld [vmem:[#allocation2 + $0x10] sm:$0xff]
    %v94 = vld [vmem:[#allocation2 + $0x18] sm:$0xff]
    %v95 = vpack.c.bf16 %v93, %v91
    %v96 = vpack.c.bf16 %v94, %v92
    %v97 = vld [vmem:[#allocation5] sm:$0xff]
    %v98 = vld [vmem:[#allocation5 + $0x8] sm:$0xff]
    %v99 = vld [vmem:[#allocation5 + $0x10] sm:$0xff]
    %v100 = vld [vmem:[#allocation5 + $0x18] sm:$0xff]
    %v101 = vld [vmem:[#allocation5 + $0x20] sm:$0xff]
    %v102 = vld [vmem:[#allocation5 + $0x28] sm:$0xff]
    %v103 = vld [vmem:[#allocation5 + $0x30] sm:$0xff]
    %v104 = vld [vmem:[#allocation5 + $0x38] sm:$0xff]
    %v105 = vld [vmem:[#allocation5 + $0x40] sm:$0xff]
    %v106 = vld [vmem:[#allocation5 + $0x48] sm:$0xff]
    %v107 = vld [vmem:[#allocation5 + $0x50] sm:$0xff]
    %v108 = vld [vmem:[#allocation5 + $0x58] sm:$0xff]
    %v109 = vld [vmem:[#allocation5 + $0x60] sm:$0xff]
    %v110 = vld [vmem:[#allocation5 + $0x68] sm:$0xff]
    %v111 = vld [vmem:[#allocation5 + $0x70] sm:$0xff]
    %v112 = vld [vmem:[#allocation5 + $0x78] sm:$0xff]
    %v113 = vld [vmem:[#allocation5 + $0x80] sm:$0xff]
    %v114 = vld [vmem:[#allocation5 + $0x88] sm:$0xff]
    %v115 = vld [vmem:[#allocation5 + $0x90] sm:$0xff]
    %v116 = vld [vmem:[#allocation5 + $0x98] sm:$0xff]
    %v117 = vld [vmem:[#allocation5 + $0xa0] sm:$0xff]
    %v118 = vld [vmem:[#allocation5 + $0xa8] sm:$0xff]
    %v119 = vld [vmem:[#allocation5 + $0xb0] sm:$0xff]
    %v120 = vld [vmem:[#allocation5 + $0xb8] sm:$0xff]
    %v121 = vld [vmem:[#allocation5 + $0xc0] sm:$0xff]
    %v122 = vld [vmem:[#allocation5 + $0xc8] sm:$0xff]
    %v123 = vld [vmem:[#allocation5 + $0xd0] sm:$0xff]
    %v124 = vld [vmem:[#allocation5 + $0xd8] sm:$0xff]
    %v125 = vld [vmem:[#allocation5 + $0xe0] sm:$0xff]
    %v126 = vld [vmem:[#allocation5 + $0xe8] sm:$0xff]
    %v127 = vld [vmem:[#allocation5 + $0xf0] sm:$0xff]
    %v128 = vld [vmem:[#allocation5 + $0xf8] sm:$0xff]
    %v129 = vld [vmem:[#allocation5 + $0x100] sm:$0xff]
    %v130 = vld [vmem:[#allocation5 + $0x108] sm:$0xff]
    %v131 = vld [vmem:[#allocation5 + $0x110] sm:$0xff]
    %v132 = vld [vmem:[#allocation5 + $0x118] sm:$0xff]
    %v133 = vld [vmem:[#allocation5 + $0x120] sm:$0xff]
    %v134 = vld [vmem:[#allocation5 + $0x128] sm:$0xff]
    %v135 = vld [vmem:[#allocation5 + $0x130] sm:$0xff]
    %v136 = vld [vmem:[#allocation5 + $0x138] sm:$0xff]
    %v137 = vld [vmem:[#allocation5 + $0x140] sm:$0xff]
    %v138 = vld [vmem:[#allocation5 + $0x148] sm:$0xff]
    %v139 = vld [vmem:[#allocation5 + $0x150] sm:$0xff]
    %v140 = vld [vmem:[#allocation5 + $0x158] sm:$0xff]
    %v141 = vld [vmem:[#allocation5 + $0x160] sm:$0xff]
    %v142 = vld [vmem:[#allocation5 + $0x168] sm:$0xff]
    %v143 = vld [vmem:[#allocation5 + $0x170] sm:$0xff]
    %v144 = vld [vmem:[#allocation5 + $0x178] sm:$0xff]
    %v145 = vld [vmem:[#allocation5 + $0x180] sm:$0xff]
    %v146 = vld [vmem:[#allocation5 + $0x188] sm:$0xff]
    %v147 = vld [vmem:[#allocation5 + $0x190] sm:$0xff]
    %v148 = vld [vmem:[#allocation5 + $0x198] sm:$0xff]
    %v149 = vld [vmem:[#allocation5 + $0x1a0] sm:$0xff]
    %v150 = vld [vmem:[#allocation5 + $0x1a8] sm:$0xff]
    %v151 = vld [vmem:[#allocation5 + $0x1b0] sm:$0xff]
    %v152 = vld [vmem:[#allocation5 + $0x1b8] sm:$0xff]
    %v153 = vld [vmem:[#allocation5 + $0x1c0] sm:$0xff]
    %v154 = vld [vmem:[#allocation5 + $0x1c8] sm:$0xff]
    %v155 = vld [vmem:[#allocation5 + $0x1d0] sm:$0xff]
    %v156 = vld [vmem:[#allocation5 + $0x1d8] sm:$0xff]
    %v157 = vld [vmem:[#allocation5 + $0x1e0] sm:$0xff]
    %v158 = vld [vmem:[#allocation5 + $0x1e8] sm:$0xff]
    %v159 = vld [vmem:[#allocation5 + $0x1f0] sm:$0xff]
    %v160 = vld [vmem:[#allocation5 + $0x1f8] sm:$0xff]
    %v161 = vld [vmem:[#allocation5 + $0x200] sm:$0xff]
    %v162 = vld [vmem:[#allocation5 + $0x208] sm:$0xff]
    %v163 = vld [vmem:[#allocation5 + $0x210] sm:$0xff]
    %v164 = vld [vmem:[#allocation5 + $0x218] sm:$0xff]
    %v165 = vld [vmem:[#allocation5 + $0x220] sm:$0xff]
    %v166 = vld [vmem:[#allocation5 + $0x228] sm:$0xff]
    %v167 = vld [vmem:[#allocation5 + $0x230] sm:$0xff]
    %v168 = vld [vmem:[#allocation5 + $0x238] sm:$0xff]
    %v169 = vld [vmem:[#allocation5 + $0x240] sm:$0xff]
    %v170 = vld [vmem:[#allocation5 + $0x248] sm:$0xff]
    %v171 = vld [vmem:[#allocation5 + $0x250] sm:$0xff]
    %v172 = vld [vmem:[#allocation5 + $0x258] sm:$0xff]
    %v173 = vld [vmem:[#allocation5 + $0x260] sm:$0xff]
    %v174 = vld [vmem:[#allocation5 + $0x268] sm:$0xff]
    %v175 = vld [vmem:[#allocation5 + $0x270] sm:$0xff]
    %v176 = vld [vmem:[#allocation5 + $0x278] sm:$0xff]
    %v177 = vld [vmem:[#allocation5 + $0x280] sm:$0xff]
    %v178 = vld [vmem:[#allocation5 + $0x288] sm:$0xff]
    %v179 = vld [vmem:[#allocation5 + $0x290] sm:$0xff]
    %v180 = vld [vmem:[#allocation5 + $0x298] sm:$0xff]
    %v181 = vld [vmem:[#allocation5 + $0x2a0] sm:$0xff]
    %v182 = vld [vmem:[#allocation5 + $0x2a8] sm:$0xff]
    %v183 = vld [vmem:[#allocation5 + $0x2b0] sm:$0xff]
    %v184 = vld [vmem:[#allocation5 + $0x2b8] sm:$0xff]
    %v185 = vld [vmem:[#allocation5 + $0x2c0] sm:$0xff]
    %v186 = vld [vmem:[#allocation5 + $0x2c8] sm:$0xff]
    %v187 = vld [vmem:[#allocation5 + $0x2d0] sm:$0xff]
    %v188 = vld [vmem:[#allocation5 + $0x2d8] sm:$0xff]
    %v189 = vld [vmem:[#allocation5 + $0x2e0] sm:$0xff]
    %v190 = vld [vmem:[#allocation5 + $0x2e8] sm:$0xff]
    %v191 = vld [vmem:[#allocation5 + $0x2f0] sm:$0xff]
    %v192 = vld [vmem:[#allocation5 + $0x2f8] sm:$0xff]
    %v289 = vunpack.c.l.b16 %v97
    %v290 = vunpack.c.h.b16 %v97
    %v291 = vunpack.c.l.b16 %v98
    %v292 = vunpack.c.h.b16 %v98
    %v293 = vunpack.c.l.b16 %v99
    %v294 = vunpack.c.h.b16 %v99
    %v295 = vunpack.c.l.b16 %v100
    %v296 = vunpack.c.h.b16 %v100
    %v297 = vunpack.c.l.b16 %v101
    %v298 = vunpack.c.h.b16 %v101
    %v299 = vunpack.c.l.b16 %v102
    %v300 = vunpack.c.h.b16 %v102
    %v301 = vunpack.c.l.b16 %v103
    %v302 = vunpack.c.h.b16 %v103
    %v303 = vunpack.c.l.b16 %v104
    %v304 = vunpack.c.h.b16 %v104
    %v305 = vunpack.c.l.b16 %v105
    %v306 = vunpack.c.h.b16 %v105
    %v307 = vunpack.c.l.b16 %v106
    %v308 = vunpack.c.h.b16 %v106
    %v309 = vunpack.c.l.b16 %v107
    %v310 = vunpack.c.h.b16 %v107
    %v311 = vunpack.c.l.b16 %v108
    %v312 = vunpack.c.h.b16 %v108
    %v313 = vunpack.c.l.b16 %v109
    %v314 = vunpack.c.h.b16 %v109
    %v315 = vunpack.c.l.b16 %v110
    %v316 = vunpack.c.h.b16 %v110
    %v317 = vunpack.c.l.b16 %v111
    %v318 = vunpack.c.h.b16 %v111
    %v319 = vunpack.c.l.b16 %v112
    %v320 = vunpack.c.h.b16 %v112
    %v321 = vunpack.c.l.b16 %v113
    %v322 = vunpack.c.h.b16 %v113
    %v323 = vunpack.c.l.b16 %v114
    %v324 = vunpack.c.h.b16 %v114
    %v325 = vunpack.c.l.b16 %v115
    %v326 = vunpack.c.h.b16 %v115
    %v327 = vunpack.c.l.b16 %v116
    %v328 = vunpack.c.h.b16 %v116
    %v329 = vunpack.c.l.b16 %v117
    %v330 = vunpack.c.h.b16 %v117
    %v331 = vunpack.c.l.b16 %v118
    %v332 = vunpack.c.h.b16 %v118
    %v333 = vunpack.c.l.b16 %v119
    %v334 = vunpack.c.h.b16 %v119
    %v335 = vunpack.c.l.b16 %v120
    %v336 = vunpack.c.h.b16 %v120
    %v337 = vunpack.c.l.b16 %v121
    %v338 = vunpack.c.h.b16 %v121
    %v339 = vunpack.c.l.b16 %v122
    %v340 = vunpack.c.h.b16 %v122
    %v341 = vunpack.c.l.b16 %v123
    %v342 = vunpack.c.h.b16 %v123
    %v343 = vunpack.c.l.b16 %v124
    %v344 = vunpack.c.h.b16 %v124
    %v345 = vunpack.c.l.b16 %v125
    %v346 = vunpack.c.h.b16 %v125
    %v347 = vunpack.c.l.b16 %v126
    %v348 = vunpack.c.h.b16 %v126
    %v349 = vunpack.c.l.b16 %v127
    %v350 = vunpack.c.h.b16 %v127
    %v351 = vunpack.c.l.b16 %v128
    %v352 = vunpack.c.h.b16 %v128
    %v353 = vunpack.c.l.b16 %v129
    %v354 = vunpack.c.h.b16 %v129
    %v355 = vunpack.c.l.b16 %v130
    %v356 = vunpack.c.h.b16 %v130
    %v357 = vunpack.c.l.b16 %v131
    %v358 = vunpack.c.h.b16 %v131
    %v359 = vunpack.c.l.b16 %v132
    %v360 = vunpack.c.h.b16 %v132
    %v361 = vunpack.c.l.b16 %v133
    %v362 = vunpack.c.h.b16 %v133
    %v363 = vunpack.c.l.b16 %v134
    %v364 = vunpack.c.h.b16 %v134
    %v365 = vunpack.c.l.b16 %v135
    %v366 = vunpack.c.h.b16 %v135
    %v367 = vunpack.c.l.b16 %v136
    %v368 = vunpack.c.h.b16 %v136
    %v369 = vunpack.c.l.b16 %v137
    %v370 = vunpack.c.h.b16 %v137
    %v371 = vunpack.c.l.b16 %v138
    %v372 = vunpack.c.h.b16 %v138
    %v373 = vunpack.c.l.b16 %v139
    %v374 = vunpack.c.h.b16 %v139
    %v375 = vunpack.c.l.b16 %v140
    %v376 = vunpack.c.h.b16 %v140
    %v377 = vunpack.c.l.b16 %v141
    %v378 = vunpack.c.h.b16 %v141
    %v379 = vunpack.c.l.b16 %v142
    %v380 = vunpack.c.h.b16 %v142
    %v381 = vunpack.c.l.b16 %v143
    %v382 = vunpack.c.h.b16 %v143
    %v383 = vunpack.c.l.b16 %v144
    %v384 = vunpack.c.h.b16 %v144
    %v385 = vunpack.c.l.b16 %v145
    %v386 = vunpack.c.h.b16 %v145
    %v387 = vunpack.c.l.b16 %v146
    %v388 = vunpack.c.h.b16 %v146
    %v389 = vunpack.c.l.b16 %v147
    %v390 = vunpack.c.h.b16 %v147
    %v391 = vunpack.c.l.b16 %v148
    %v392 = vunpack.c.h.b16 %v148
    %v393 = vunpack.c.l.b16 %v149
    %v394 = vunpack.c.h.b16 %v149
    %v395 = vunpack.c.l.b16 %v150
    %v396 = vunpack.c.h.b16 %v150
    %v397 = vunpack.c.l.b16 %v151
    %v398 = vunpack.c.h.b16 %v151
    %v399 = vunpack.c.l.b16 %v152
    %v400 = vunpack.c.h.b16 %v152
    %v401 = vunpack.c.l.b16 %v153
    %v402 = vunpack.c.h.b16 %v153
    %v403 = vunpack.c.l.b16 %v154
    %v404 = vunpack.c.h.b16 %v154
    %v405 = vunpack.c.l.b16 %v155
    %v406 = vunpack.c.h.b16 %v155
    %v407 = vunpack.c.l.b16 %v156
    %v408 = vunpack.c.h.b16 %v156
    %v409 = vunpack.c.l.b16 %v157
    %v410 = vunpack.c.h.b16 %v157
    %v411 = vunpack.c.l.b16 %v158
    %v412 = vunpack.c.h.b16 %v158
    %v413 = vunpack.c.l.b16 %v159
    %v414 = vunpack.c.h.b16 %v159
    %v415 = vunpack.c.l.b16 %v160
    %v416 = vunpack.c.h.b16 %v160
    %v417 = vunpack.c.l.b16 %v161
    %v418 = vunpack.c.h.b16 %v161
    %v419 = vunpack.c.l.b16 %v162
    %v420 = vunpack.c.h.b16 %v162
    %v421 = vunpack.c.l.b16 %v163
    %v422 = vunpack.c.h.b16 %v163
    %v423 = vunpack.c.l.b16 %v164
    %v424 = vunpack.c.h.b16 %v164
    %v425 = vunpack.c.l.b16 %v165
    %v426 = vunpack.c.h.b16 %v165
    %v427 = vunpack.c.l.b16 %v166
    %v428 = vunpack.c.h.b16 %v166
    %v429 = vunpack.c.l.b16 %v167
    %v430 = vunpack.c.h.b16 %v167
    %v431 = vunpack.c.l.b16 %v168
    %v432 = vunpack.c.h.b16 %v168
    %v433 = vunpack.c.l.b16 %v169
    %v434 = vunpack.c.h.b16 %v169
    %v435 = vunpack.c.l.b16 %v170
    %v436 = vunpack.c.h.b16 %v170
    %v437 = vunpack.c.l.b16 %v171
    %v438 = vunpack.c.h.b16 %v171
    %v439 = vunpack.c.l.b16 %v172
    %v440 = vunpack.c.h.b16 %v172
    %v441 = vunpack.c.l.b16 %v173
    %v442 = vunpack.c.h.b16 %v173
    %v443 = vunpack.c.l.b16 %v174
    %v444 = vunpack.c.h.b16 %v174
    %v445 = vunpack.c.l.b16 %v175
    %v446 = vunpack.c.h.b16 %v175
    %v447 = vunpack.c.l.b16 %v176
    %v448 = vunpack.c.h.b16 %v176
    %v449 = vunpack.c.l.b16 %v177
    %v450 = vunpack.c.h.b16 %v177
    %v451 = vunpack.c.l.b16 %v178
    %v452 = vunpack.c.h.b16 %v178
    %v453 = vunpack.c.l.b16 %v179
    %v454 = vunpack.c.h.b16 %v179
    %v455 = vunpack.c.l.b16 %v180
    %v456 = vunpack.c.h.b16 %v180
    %v457 = vunpack.c.l.b16 %v181
    %v458 = vunpack.c.h.b16 %v181
    %v459 = vunpack.c.l.b16 %v182
    %v460 = vunpack.c.h.b16 %v182
    %v461 = vunpack.c.l.b16 %v183
    %v462 = vunpack.c.h.b16 %v183
    %v463 = vunpack.c.l.b16 %v184
    %v464 = vunpack.c.h.b16 %v184
    %v465 = vunpack.c.l.b16 %v185
    %v466 = vunpack.c.h.b16 %v185
    %v467 = vunpack.c.l.b16 %v186
    %v468 = vunpack.c.h.b16 %v186
    %v469 = vunpack.c.l.b16 %v187
    %v470 = vunpack.c.h.b16 %v187
    %v471 = vunpack.c.l.b16 %v188
    %v472 = vunpack.c.h.b16 %v188
    %v473 = vunpack.c.l.b16 %v189
    %v474 = vunpack.c.h.b16 %v189
    %v475 = vunpack.c.l.b16 %v190
    %v476 = vunpack.c.h.b16 %v190
    %v477 = vunpack.c.l.b16 %v191
    %v478 = vunpack.c.h.b16 %v191
    %v479 = vunpack.c.l.b16 %v192
    %v480 = vunpack.c.h.b16 %v192
    %v481 = vpack.c.b16 %v295, %v289
    %v482 = vpack.c.b16 %v296, %v290
    %v483 = vpack.c.b16 %v297, %v291
    %v484 = vpack.c.b16 %v298, %v292
    %v485 = vpack.c.b16 %v299, %v293
    %v486 = vpack.c.b16 %v300, %v294
    %v487 = vpack.c.b16 %v307, %v301
    %v488 = vpack.c.b16 %v308, %v302
    %v489 = vpack.c.b16 %v309, %v303
    %v490 = vpack.c.b16 %v310, %v304
    %v491 = vpack.c.b16 %v311, %v305
    %v492 = vpack.c.b16 %v312, %v306
    %v493 = vpack.c.b16 %v319, %v313
    %v494 = vpack.c.b16 %v320, %v314
    %v495 = vpack.c.b16 %v321, %v315
    %v496 = vpack.c.b16 %v322, %v316
    %v497 = vpack.c.b16 %v323, %v317
    %v498 = vpack.c.b16 %v324, %v318
    %v499 = vpack.c.b16 %v331, %v325
    %v500 = vpack.c.b16 %v332, %v326
    %v501 = vpack.c.b16 %v333, %v327
    %v502 = vpack.c.b16 %v334, %v328
    %v503 = vpack.c.b16 %v335, %v329
    %v504 = vpack.c.b16 %v336, %v330
    %v505 = vpack.c.b16 %v343, %v337
    %v506 = vpack.c.b16 %v344, %v338
    %v507 = vpack.c.b16 %v345, %v339
    %v508 = vpack.c.b16 %v346, %v340
    %v509 = vpack.c.b16 %v347, %v341
    %v510 = vpack.c.b16 %v348, %v342
    %v511 = vpack.c.b16 %v355, %v349
    %v512 = vpack.c.b16 %v356, %v350
    %v513 = vpack.c.b16 %v357, %v351
    %v514 = vpack.c.b16 %v358, %v352
    %v515 = vpack.c.b16 %v359, %v353
    %v516 = vpack.c.b16 %v360, %v354
    %v517 = vpack.c.b16 %v367, %v361
    %v518 = vpack.c.b16 %v368, %v362
    %v519 = vpack.c.b16 %v369, %v363
    %v520 = vpack.c.b16 %v370, %v364
    %v521 = vpack.c.b16 %v371, %v365
    %v522 = vpack.c.b16 %v372, %v366
    %v523 = vpack.c.b16 %v379, %v373
    %v524 = vpack.c.b16 %v380, %v374
    %v525 = vpack.c.b16 %v381, %v375
    %v526 = vpack.c.b16 %v382, %v376
    %v527 = vpack.c.b16 %v383, %v377
    %v528 = vpack.c.b16 %v384, %v378
    %v529 = vpack.c.b16 %v391, %v385
    %v530 = vpack.c.b16 %v392, %v386
    %v531 = vpack.c.b16 %v393, %v387
    %v532 = vpack.c.b16 %v394, %v388
    %v533 = vpack.c.b16 %v395, %v389
    %v534 = vpack.c.b16 %v396, %v390
    %v535 = vpack.c.b16 %v403, %v397
    %v536 = vpack.c.b16 %v404, %v398
    %v537 = vpack.c.b16 %v405, %v399
    %v538 = vpack.c.b16 %v406, %v400
    %v539 = vpack.c.b16 %v407, %v401
    %v540 = vpack.c.b16 %v408, %v402
    %v541 = vpack.c.b16 %v415, %v409
    %v542 = vpack.c.b16 %v416, %v410
    %v543 = vpack.c.b16 %v417, %v411
    %v544 = vpack.c.b16 %v418, %v412
    %v545 = vpack.c.b16 %v419, %v413
    %v546 = vpack.c.b16 %v420, %v414
    %v547 = vpack.c.b16 %v427, %v421
    %v548 = vpack.c.b16 %v428, %v422
    %v549 = vpack.c.b16 %v429, %v423
    %v550 = vpack.c.b16 %v430, %v424
    %v551 = vpack.c.b16 %v431, %v425
    %v552 = vpack.c.b16 %v432, %v426
    %v553 = vpack.c.b16 %v439, %v433
    %v554 = vpack.c.b16 %v440, %v434
    %v555 = vpack.c.b16 %v441, %v435
    %v556 = vpack.c.b16 %v442, %v436
    %v557 = vpack.c.b16 %v443, %v437
    %v558 = vpack.c.b16 %v444, %v438
    %v559 = vpack.c.b16 %v451, %v445
    %v560 = vpack.c.b16 %v452, %v446
    %v561 = vpack.c.b16 %v453, %v447
    %v562 = vpack.c.b16 %v454, %v448
    %v563 = vpack.c.b16 %v455, %v449
    %v564 = vpack.c.b16 %v456, %v450
    %v565 = vpack.c.b16 %v463, %v457
    %v566 = vpack.c.b16 %v464, %v458
    %v567 = vpack.c.b16 %v465, %v459
    %v568 = vpack.c.b16 %v466, %v460
    %v569 = vpack.c.b16 %v467, %v461
    %v570 = vpack.c.b16 %v468, %v462
    %v571 = vpack.c.b16 %v475, %v469
    %v572 = vpack.c.b16 %v476, %v470
    %v573 = vpack.c.b16 %v477, %v471
    %v574 = vpack.c.b16 %v478, %v472
    %v575 = vpack.c.b16 %v479, %v473
    %v576 = vpack.c.b16 %v480, %v474
    %673 = vmatprep.subr.bf16.mxu0 %v482
    %674 = vmatpush1.bf16.msra.mxu0 %v481
    %675 = vmatprep.subr.bf16.mxu0 %v488
    %676 = vmatpush1.bf16.msra.mxu0 %v487
    %677 = vmatprep.subr.bf16.mxu0 %v494
    %678 = vmatpush1.bf16.msra.mxu0 %v493
    %679 = vmatprep.subr.bf16.mxu0 %v500
    %680 = vmatpush1.bf16.msra.mxu0 %v499
    %681 = vmatprep.subr.bf16.mxu0 %v506
    %682 = vmatpush1.bf16.msra.mxu0 %v505
    %683 = vmatprep.subr.bf16.mxu0 %v512
    %684 = vmatpush1.bf16.msra.mxu0 %v511
    %685 = vmatprep.subr.bf16.mxu0 %v518
    %686 = vmatpush1.bf16.msra.mxu0 %v517
    %687 = vmatprep.subr.bf16.mxu0 %v524
    %688 = vmatpush1.bf16.msra.mxu0 %v523
    %689 = vmatprep.subr.bf16.mxu0 %v530
    %690 = vmatpush1.bf16.msra.mxu0 %v529
    %691 = vmatprep.subr.bf16.mxu0 %v536
    %692 = vmatpush1.bf16.msra.mxu0 %v535
    %693 = vmatprep.subr.bf16.mxu0 %v542
    %694 = vmatpush1.bf16.msra.mxu0 %v541
    %695 = vmatprep.subr.bf16.mxu0 %v548
    %696 = vmatpush1.bf16.msra.mxu0 %v547
    %697 = vmatprep.subr.bf16.mxu0 %v554
    %698 = vmatpush1.bf16.msra.mxu0 %v553
    %699 = vmatprep.subr.bf16.mxu0 %v560
    %700 = vmatpush1.bf16.msra.mxu0 %v559
    %701 = vmatprep.subr.bf16.mxu0 %v566
    %702 = vmatpush1.bf16.msra.mxu0 %v565
    %703 = vmatprep.subr.bf16.mxu0 %v572
    %704 = vmatpush1.bf16.msra.mxu0 %v571
    %705 = vmatprep.mubr.bf16.mxu0 %v96
    %706 = vmatmul.mubr.bf16.gmra.mrb[0].mxu0 %v95
    %v707 = vpop.f32.mrb[0].mxu0
    %v708 = vadd.f32 0.0, %v707
    %v709 = vpop.f32.mrb[0].mxu0
    %v710 = vadd.f32 0.0, %v709
    %v711 = vpop.f32.mrb[0].mxu0
    %v712 = vadd.f32 0.0, %v711
    %v713 = vpop.f32.mrb[0].mxu0
    %v714 = vadd.f32 0.0, %v713
    %715 = vdwg.mxu0
    %716 = vmatprep.subr.bf16.mxu0 %v484
    %717 = vmatpush1.bf16.msra.mxu0 %v483
    %718 = vmatprep.subr.bf16.mxu0 %v490
    %719 = vmatpush1.bf16.msra.mxu0 %v489
    %720 = vmatprep.subr.bf16.mxu0 %v496
    %721 = vmatpush1.bf16.msra.mxu0 %v495
    %722 = vmatprep.subr.bf16.mxu0 %v502
    %723 = vmatpush1.bf16.msra.mxu0 %v501
    %724 = vmatprep.subr.bf16.mxu0 %v508
    %725 = vmatpush1.bf16.msra.mxu0 %v507
    %726 = vmatprep.subr.bf16.mxu0 %v514
    %727 = vmatpush1.bf16.msra.mxu0 %v513
    %728 = vmatprep.subr.bf16.mxu0 %v520
    %729 = vmatpush1.bf16.msra.mxu0 %v519
    %730 = vmatprep.subr.bf16.mxu0 %v526
    %731 = vmatpush1.bf16.msra.mxu0 %v525
    %732 = vmatprep.subr.bf16.mxu0 %v532
    %733 = vmatpush1.bf16.msra.mxu0 %v531
    %734 = vmatprep.subr.bf16.mxu0 %v538
    %735 = vmatpush1.bf16.msra.mxu0 %v537
    %736 = vmatprep.subr.bf16.mxu0 %v544
    %737 = vmatpush1.bf16.msra.mxu0 %v543
    %738 = vmatprep.subr.bf16.mxu0 %v550
    %739 = vmatpush1.bf16.msra.mxu0 %v549
    %740 = vmatprep.subr.bf16.mxu0 %v556
    %741 = vmatpush1.bf16.msra.mxu0 %v555
    %742 = vmatprep.subr.bf16.mxu0 %v562
    %743 = vmatpush1.bf16.msra.mxu0 %v561
    %744 = vmatprep.subr.bf16.mxu0 %v568
    %745 = vmatpush1.bf16.msra.mxu0 %v567
    %746 = vmatprep.subr.bf16.mxu0 %v574
    %747 = vmatpush1.bf16.msra.mxu0 %v573
    %748 = vmatprep.mubr.bf16.mxu0 %v96
    %749 = vmatmul.mubr.bf16.gmra.mrb[0].mxu0 %v95
    %v750 = vpop.f32.mrb[0].mxu0
    %v751 = vadd.f32 0.0, %v750
    %v752 = vpop.f32.mrb[0].mxu0
    %v753 = vadd.f32 0.0, %v752
    %v754 = vpop.f32.mrb[0].mxu0
    %v755 = vadd.f32 0.0, %v754
    %v756 = vpop.f32.mrb[0].mxu0
    %v757 = vadd.f32 0.0, %v756
    %758 = vdwg.mxu0
    %759 = vmatprep.subr.bf16.mxu0 %v486
    %760 = vmatpush1.bf16.msra.mxu0 %v485
    %761 = vmatprep.subr.bf16.mxu0 %v492
    %762 = vmatpush1.bf16.msra.mxu0 %v491
    %763 = vmatprep.subr.bf16.mxu0 %v498
    %764 = vmatpush1.bf16.msra.mxu0 %v497
    %765 = vmatprep.subr.bf16.mxu0 %v504
    %766 = vmatpush1.bf16.msra.mxu0 %v503
    %767 = vmatprep.subr.bf16.mxu0 %v510
    %768 = vmatpush1.bf16.msra.mxu0 %v509
    %769 = vmatprep.subr.bf16.mxu0 %v516
    %770 = vmatpush1.bf16.msra.mxu0 %v515
    %771 = vmatprep.subr.bf16.mxu0 %v522
    %772 = vmatpush1.bf16.msra.mxu0 %v521
    %773 = vmatprep.subr.bf16.mxu0 %v528
    %774 = vmatpush1.bf16.msra.mxu0 %v527
    %775 = vmatprep.subr.bf16.mxu0 %v534
    %776 = vmatpush1.bf16.msra.mxu0 %v533
    %777 = vmatprep.subr.bf16.mxu0 %v540
    %778 = vmatpush1.bf16.msra.mxu0 %v539
    %779 = vmatprep.subr.bf16.mxu0 %v546
    %780 = vmatpush1.bf16.msra.mxu0 %v545
    %781 = vmatprep.subr.bf16.mxu0 %v552
    %782 = vmatpush1.bf16.msra.mxu0 %v551
    %783 = vmatprep.subr.bf16.mxu0 %v558
    %784 = vmatpush1.bf16.msra.mxu0 %v557
    %785 = vmatprep.subr.bf16.mxu0 %v564
    %786 = vmatpush1.bf16.msra.mxu0 %v563
    %787 = vmatprep.subr.bf16.mxu0 %v570
    %788 = vmatpush1.bf16.msra.mxu0 %v569
    %789 = vmatprep.subr.bf16.mxu0 %v576
    %790 = vmatpush1.bf16.msra.mxu0 %v575
    %791 = vmatprep.mubr.bf16.mxu0 %v96
    %792 = vmatmul.mubr.bf16.gmra.mrb[0].mxu0 %v95
    %v793 = vpop.f32.mrb[0].mxu0
    %v794 = vadd.f32 0.0, %v793
    %v795 = vpop.f32.mrb[0].mxu0
    %v796 = vadd.f32 0.0, %v795
    %v797 = vpop.f32.mrb[0].mxu0
    %v798 = vadd.f32 0.0, %v797
    %v799 = vpop.f32.mrb[0].mxu0
    %v800 = vadd.f32 0.0, %v799
    %801 = vdwg.mxu0
    %v802 = vpack.c.bf16 %v712, %v708
    %v803 = vpack.c.bf16 %v714, %v710
    %v804 = vpack.c.bf16 %v755, %v751
    %v805 = vpack.c.bf16 %v757, %v753
    %v806 = vpack.c.bf16 %v798, %v794
    %v807 = vpack.c.bf16 %v800, %v796
    %808 = vmatprep.subr.bf16.mxu0 0
    %809 = vmatpush1.bf16.xpose.msra.mxu0 %v804
    %810 = vmatprep.subr.bf16.mxu0 0
    %811 = vmatpush1.bf16.xpose.msra.mxu0 0
    %812 = vmatprep.subr.bf16.mxu0 0
    %813 = vmatpush1.bf16.xpose.msra.mxu0 0
    %814 = vmatprep.subr.bf16.mxu0 0
    %815 = vmatpush1.bf16.xpose.msra.mxu0 0
    %816 = vmatprep.subr.bf16.mxu0 0
    %817 = vmatpush1.bf16.xpose.msra.mxu0 0
    %818 = vmatprep.subr.bf16.mxu0 0
    %819 = vmatpush1.bf16.xpose.msra.mxu0 0
    %820 = vmatprep.subr.bf16.mxu0 0
    %821 = vmatpush1.bf16.xpose.msra.mxu0 0
    %822 = vmatprep.subr.bf16.mxu0 0
    %823 = vmatpush1.bf16.xpose.msra.mxu0 0
    %824 = vmatprep.subr.bf16.mxu0 0
    %825 = vmatpush1.bf16.xpose.msra.mxu0 0
    %826 = vmatprep.subr.bf16.mxu0 0
    %827 = vmatpush1.bf16.xpose.msra.mxu0 0
    %828 = vmatprep.subr.bf16.mxu0 0
    %829 = vmatpush1.bf16.xpose.msra.mxu0 0
    %830 = vmatprep.subr.bf16.mxu0 0
    %831 = vmatpush1.bf16.xpose.msra.mxu0 0
    %832 = vmatprep.subr.bf16.mxu0 0
    %833 = vmatpush1.bf16.xpose.msra.mxu0 0
    %834 = vmatprep.subr.bf16.mxu0 0
    %835 = vmatpush1.bf16.xpose.msra.mxu0 0
    %836 = vmatprep.subr.bf16.mxu0 0
    %837 = vmatpush1.bf16.xpose.msra.mxu0 0
    %838 = vmatprep.subr.bf16.mxu0 0
    %839 = vmatpush1.bf16.xpose.msra.mxu0 0
    %840 = vmatprep.mubr.bf16.mxu0 0
    %841 = vmatmul.mubr.bf16.gmra.mrb[0].mxu0 %v802
    %v842 = vpop.f32.mrb[0].mxu0
    %v843 = vadd.f32 0.0, %v842
    %v844 = vpop.f32.mrb[0].mxu0
    %v845 = vpop.f32.mrb[0].mxu0
    %v846 = vpop.f32.mrb[0].mxu0
    %847 = vdwg.mxu0
    %vm848 = vcmask 64512
    %v849 = vsel %vm848, %v843, -inf
    %850 = vmax.xlane.f32.xlu0 %v849
    %v851 = vpop.xlane.xlu0 %850
    %v852 = vsub.f32 %v843, %v851
    %v853 = vmul.f32 %v852, 1.442695
    %v854 = vpow.pop %v853
    %v855 = vsel %vm848, %v854, 0.0
    %856 = vadd.xlane.f32.xlu0 %v855
    %v857 = vpop.xlane.xlu0 %856
    %v858 = vpack.c.bf16 %v854, %v854
    %v860 = vsel %vm848, %v858, 0
    %vm862 = vcmask 1043456
    %v864 = vsel %vm862, %v806, 0
    %866 = vmatprep.subr.bf16.mxu0 0
    %867 = vmatpush1.bf16.msra.mxu0 %v864
    %868 = vmatprep.subr.bf16.mxu0 0
    %869 = vmatpush1.bf16.msra.mxu0 0
    %870 = vmatprep.subr.bf16.mxu0 0
    %871 = vmatpush1.bf16.msra.mxu0 0
    %872 = vmatprep.subr.bf16.mxu0 0
    %873 = vmatpush1.bf16.msra.mxu0 0
    %874 = vmatprep.subr.bf16.mxu0 0
    %875 = vmatpush1.bf16.msra.mxu0 0
    %876 = vmatprep.subr.bf16.mxu0 0
    %877 = vmatpush1.bf16.msra.mxu0 0
    %878 = vmatprep.subr.bf16.mxu0 0
    %879 = vmatpush1.bf16.msra.mxu0 0
    %880 = vmatprep.subr.bf16.mxu0 0
    %881 = vmatpush1.bf16.msra.mxu0 0
    %882 = vmatprep.subr.bf16.mxu0 0
    %883 = vmatpush1.bf16.msra.mxu0 0
    %884 = vmatprep.subr.bf16.mxu0 0
    %885 = vmatpush1.bf16.msra.mxu0 0
    %886 = vmatprep.subr.bf16.mxu0 0
    %887 = vmatpush1.bf16.msra.mxu0 0
    %888 = vmatprep.subr.bf16.mxu0 0
    %889 = vmatpush1.bf16.msra.mxu0 0
    %890 = vmatprep.subr.bf16.mxu0 0
    %891 = vmatpush1.bf16.msra.mxu0 0
    %892 = vmatprep.subr.bf16.mxu0 0
    %893 = vmatpush1.bf16.msra.mxu0 0
    %894 = vmatprep.subr.bf16.mxu0 0
    %895 = vmatpush1.bf16.msra.mxu0 0
    %896 = vmatprep.subr.bf16.mxu0 0
    %897 = vmatpush1.bf16.msra.mxu0 0
    %898 = vmatprep.mubr.bf16.mxu0 0
    %899 = vmatmul.mubr.bf16.gmra.mrb[0].mxu0 %v860
    %v900 = vpop.f32.mrb[0].mxu0
    %v901 = vadd.f32 0.0, %v900
    %v902 = vpop.f32.mrb[0].mxu0
    %v903 = vpop.f32.mrb[0].mxu0
    %v904 = vpop.f32.mrb[0].mxu0
    %905 = vdwg.mxu0
    %v906 = vrcp.pop %v857
    %v907 = vmul.f32 %v901, %v906
    %908 = vmatprep.subr.bf16.mxu0 0
    %909 = vmatpush1.bf16.xpose.msra.mxu0 %v805
    %910 = vmatprep.subr.bf16.mxu0 0
    %911 = vmatpush1.bf16.xpose.msra.mxu0 0
    %912 = vmatprep.subr.bf16.mxu0 0
    %913 = vmatpush1.bf16.xpose.msra.mxu0 0
    %914 = vmatprep.subr.bf16.mxu0 0
    %915 = vmatpush1.bf16.xpose.msra.mxu0 0
    %916 = vmatprep.subr.bf16.mxu0 0
    %917 = vmatpush1.bf16.xpose.msra.mxu0 0
    %918 = vmatprep.subr.bf16.mxu0 0
    %919 = vmatpush1.bf16.xpose.msra.mxu0 0
    %920 = vmatprep.subr.bf16.mxu0 0
    %921 = vmatpush1.bf16.xpose.msra.mxu0 0
    %922 = vmatprep.subr.bf16.mxu0 0
    %923 = vmatpush1.bf16.xpose.msra.mxu0 0
    %924 = vmatprep.subr.bf16.mxu0 0
    %925 = vmatpush1.bf16.xpose.msra.mxu0 0
    %926 = vmatprep.subr.bf16.mxu0 0
    %927 = vmatpush1.bf16.xpose.msra.mxu0 0
    %928 = vmatprep.subr.bf16.mxu0 0
    %929 = vmatpush1.bf16.xpose.msra.mxu0 0
    %930 = vmatprep.subr.bf16.mxu0 0
    %931 = vmatpush1.bf16.xpose.msra.mxu0 0
    %932 = vmatprep.subr.bf16.mxu0 0
    %933 = vmatpush1.bf16.xpose.msra.mxu0 0
    %934 = vmatprep.subr.bf16.mxu0 0
    %935 = vmatpush1.bf16.xpose.msra.mxu0 0
    %936 = vmatprep.subr.bf16.mxu0 0
    %937 = vmatpush1.bf16.xpose.msra.mxu0 0
    %938 = vmatprep.subr.bf16.mxu0 0
    %939 = vmatpush1.bf16.xpose.msra.mxu0 0
    %940 = vmatprep.mubr.bf16.mxu0 0
    %941 = vmatmul.mubr.bf16.gmra.mrb[0].mxu0 %v803
    %v942 = vpop.f32.mrb[0].mxu0
    %v943 = vadd.f32 0.0, %v942
    %v944 = vpop.f32.mrb[0].mxu0
    %v945 = vpop.f32.mrb[0].mxu0
    %v946 = vpop.f32.mrb[0].mxu0
    %947 = vdwg.mxu0
    %v948 = vsel %vm848, %v943, -inf
    %949 = vmax.xlane.f32.xlu0 %v948
    %v950 = vpop.xlane.xlu0 %949
    %v951 = vsub.f32 %v943, %v950
    %v952 = vmul.f32 %v951, 1.442695
    %v953 = vpow.pop %v952
    %v954 = vsel %vm848, %v953, 0.0
    %955 = vadd.xlane.f32.xlu0 %v954
    %v956 = vpop.xlane.xlu0 %955
    %v957 = vpack.c.bf16 %v953, %v953
    %v959 = vsel %vm848, %v957, 0
    %v962 = vsel %vm862, %v807, 0
    %964 = vmatprep.subr.bf16.mxu0 0
    %965 = vmatpush1.bf16.msra.mxu0 %v962
    %966 = vmatprep.subr.bf16.mxu0 0
    %967 = vmatpush1.bf16.msra.mxu0 0
    %968 = vmatprep.subr.bf16.mxu0 0
    %969 = vmatpush1.bf16.msra.mxu0 0
    %970 = vmatprep.subr.bf16.mxu0 0
    %971 = vmatpush1.bf16.msra.mxu0 0
    %972 = vmatprep.subr.bf16.mxu0 0
    %973 = vmatpush1.bf16.msra.mxu0 0
    %974 = vmatprep.subr.bf16.mxu0 0
    %975 = vmatpush1.bf16.msra.mxu0 0
    %976 = vmatprep.subr.bf16.mxu0 0
    %977 = vmatpush1.bf16.msra.mxu0 0
    %978 = vmatprep.subr.bf16.mxu0 0
    %979 = vmatpush1.bf16.msra.mxu0 0
    %980 = vmatprep.subr.bf16.mxu0 0
    %981 = vmatpush1.bf16.msra.mxu0 0
    %982 = vmatprep.subr.bf16.mxu0 0
    %983 = vmatpush1.bf16.msra.mxu0 0
    %984 = vmatprep.subr.bf16.mxu0 0
    %985 = vmatpush1.bf16.msra.mxu0 0
    %986 = vmatprep.subr.bf16.mxu0 0
    %987 = vmatpush1.bf16.msra.mxu0 0
    %988 = vmatprep.subr.bf16.mxu0 0
    %989 = vmatpush1.bf16.msra.mxu0 0
    %990 = vmatprep.subr.bf16.mxu0 0
    %991 = vmatpush1.bf16.msra.mxu0 0
    %992 = vmatprep.subr.bf16.mxu0 0
    %993 = vmatpush1.bf16.msra.mxu0 0
    %994 = vmatprep.subr.bf16.mxu0 0
    %995 = vmatpush1.bf16.msra.mxu0 0
    %996 = vmatprep.mubr.bf16.mxu0 0
    %997 = vmatmul.mubr.bf16.gmra.mrb[0].mxu0 %v959
    %v998 = vpop.f32.mrb[0].mxu0
    %v999 = vadd.f32 0.0, %v998
    %v1000 = vpop.f32.mrb[0].mxu0
    %v1001 = vpop.f32.mrb[0].mxu0
    %v1002 = vpop.f32.mrb[0].mxu0
    %1003 = vdwg.mxu0
    %v1004 = vrcp.pop %v956
    %v1005 = vmul.f32 %v999, %v1004
    %v1007 = vrot.slane %v802, 4
    %v1010 = vrot.slane %v804, 4
    %1012 = vmatprep.subr.bf16.mxu0 0
    %1013 = vmatpush1.bf16.xpose.msra.mxu0 %v1010
    %1014 = vmatprep.subr.bf16.mxu0 0
    %1015 = vmatpush1.bf16.xpose.msra.mxu0 0
    %1016 = vmatprep.subr.bf16.mxu0 0
    %1017 = vmatpush1.bf16.xpose.msra.mxu0 0
    %1018 = vmatprep.subr.bf16.mxu0 0
    %1019 = vmatpush1.bf16.xpose.msra.mxu0 0
    %1020 = vmatprep.subr.bf16.mxu0 0
    %1021 = vmatpush1.bf16.xpose.msra.mxu0 0
    %1022 = vmatprep.subr.bf16.mxu0 0
    %1023 = vmatpush1.bf16.xpose.msra.mxu0 0
    %1024 = vmatprep.subr.bf16.mxu0 0
    %1025 = vmatpush1.bf16.xpose.msra.mxu0 0
    %1026 = vmatprep.subr.bf16.mxu0 0
    %1027 = vmatpush1.bf16.xpose.msra.mxu0 0
    %1028 = vmatprep.subr.bf16.mxu0 0
    %1029 = vmatpush1.bf16.xpose.msra.mxu0 0
    %1030 = vmatprep.subr.bf16.mxu0 0
    %1031 = vmatpush1.bf16.xpose.msra.mxu0 0
    %1032 = vmatprep.subr.bf16.mxu0 0
    %1033 = vmatpush1.bf16.xpose.msra.mxu0 0
    %1034 = vmatprep.subr.bf16.mxu0 0
    %1035 = vmatpush1.bf16.xpose.msra.mxu0 0
    %1036 = vmatprep.subr.bf16.mxu0 0
    %1037 = vmatpush1.bf16.xpose.msra.mxu0 0
    %1038 = vmatprep.subr.bf16.mxu0 0
    %1039 = vmatpush1.bf16.xpose.msra.mxu0 0
    %1040 = vmatprep.subr.bf16.mxu0 0
    %1041 = vmatpush1.bf16.xpose.msra.mxu0 0
    %1042 = vmatprep.subr.bf16.mxu0 0
    %1043 = vmatpush1.bf16.xpose.msra.mxu0 0
    %1044 = vmatprep.mubr.bf16.mxu0 0
    %1045 = vmatmul.mubr.bf16.gmra.mrb[0].mxu0 %v1007
    %v1046 = vpop.f32.mrb[0].mxu0
    %v1047 = vadd.f32 0.0, %v1046
    %v1048 = vpop.f32.mrb[0].mxu0
    %v1049 = vpop.f32.mrb[0].mxu0
    %v1050 = vpop.f32.mrb[0].mxu0
    %1051 = vdwg.mxu0
    %v1052 = vsel %vm848, %v1047, -inf
    %1053 = vmax.xlane.f32.xlu0 %v1052
    %v1054 = vpop.xlane.xlu0 %1053
    %v1055 = vsub.f32 %v1047, %v1054
    %v1056 = vmul.f32 %v1055, 1.442695
    %v1057 = vpow.pop %v1056
    %v1058 = vsel %vm848, %v1057, 0.0
    %1059 = vadd.xlane.f32.xlu0 %v1058
    %v1060 = vpop.xlane.xlu0 %1059
    %v1061 = vpack.c.bf16 %v1057, %v1057
    %v1063 = vrot.slane %v806, 4
    %v1065 = vsel %vm848, %v1061, 0
    %v1068 = vsel %vm862, %v1063, 0
    %1070 = vmatprep.subr.bf16.mxu0 0
    %1071 = vmatpush1.bf16.msra.mxu0 %v1068
    %1072 = vmatprep.subr.bf16.mxu0 0
    %1073 = vmatpush1.bf16.msra.mxu0 0
    %1074 = vmatprep.subr.bf16.mxu0 0
    %1075 = vmatpush1.bf16.msra.mxu0 0
    %1076 = vmatprep.subr.bf16.mxu0 0
    %1077 = vmatpush1.bf16.msra.mxu0 0
    %1078 = vmatprep.subr.bf16.mxu0 0
    %1079 = vmatpush1.bf16.msra.mxu0 0
    %1080 = vmatprep.subr.bf16.mxu0 0
    %1081 = vmatpush1.bf16.msra.mxu0 0
    %1082 = vmatprep.subr.bf16.mxu0 0
    %1083 = vmatpush1.bf16.msra.mxu0 0
    %1084 = vmatprep.subr.bf16.mxu0 0
    %1085 = vmatpush1.bf16.msra.mxu0 0
    %1086 = vmatprep.subr.bf16.mxu0 0
    %1087 = vmatpush1.bf16.msra.mxu0 0
    %1088 = vmatprep.subr.bf16.mxu0 0
    %1089 = vmatpush1.bf16.msra.mxu0 0
    %1090 = vmatprep.subr.bf16.mxu0 0
    %1091 = vmatpush1.bf16.msra.mxu0 0
    %1092 = vmatprep.subr.bf16.mxu0 0
    %1093 = vmatpush1.bf16.msra.mxu0 0
    %1094 = vmatprep.subr.bf16.mxu0 0
    %1095 = vmatpush1.bf16.msra.mxu0 0
    %1096 = vmatprep.subr.bf16.mxu0 0
    %1097 = vmatpush1.bf16.msra.mxu0 0
    %1098 = vmatprep.subr.bf16.mxu0 0
    %1099 = vmatpush1.bf16.msra.mxu0 0
    %1100 = vmatprep.subr.bf16.mxu0 0
    %1101 = vmatpush1.bf16.msra.mxu0 0
    %1102 = vmatprep.mubr.bf16.mxu0 0
    %1103 = vmatmul.mubr.bf16.gmra.mrb[0].mxu0 %v1065
    %v1104 = vpop.f32.mrb[0].mxu0
    %v1105 = vadd.f32 0.0, %v1104
    %v1106 = vpop.f32.mrb[0].mxu0
    %v1107 = vpop.f32.mrb[0].mxu0
    %v1108 = vpop.f32.mrb[0].mxu0
    %1109 = vdwg.mxu0
    %v1110 = vrcp.pop %v1060
    %v1111 = vmul.f32 %v1105, %v1110
    %v1113 = vrot.slane %v803, 4
    %v1116 = vrot.slane %v805, 4
    %1118 = vmatprep.subr.bf16.mxu0 0
    %1119 = vmatpush1.bf16.xpose.msra.mxu0 %v1116
    %1120 = vmatprep.subr.bf16.mxu0 0
    %1121 = vmatpush1.bf16.xpose.msra.mxu0 0
    %1122 = vmatprep.subr.bf16.mxu0 0
    %1123 = vmatpush1.bf16.xpose.msra.mxu0 0
    %1124 = vmatprep.subr.bf16.mxu0 0
    %1125 = vmatpush1.bf16.xpose.msra.mxu0 0
    %1126 = vmatprep.subr.bf16.mxu0 0
    %1127 = vmatpush1.bf16.xpose.msra.mxu0 0
    %1128 = vmatprep.subr.bf16.mxu0 0
    %1129 = vmatpush1.bf16.xpose.msra.mxu0 0
    %1130 = vmatprep.subr.bf16.mxu0 0
    %1131 = vmatpush1.bf16.xpose.msra.mxu0 0
    %1132 = vmatprep.subr.bf16.mxu0 0
    %1133 = vmatpush1.bf16.xpose.msra.mxu0 0
    %1134 = vmatprep.subr.bf16.mxu0 0
    %1135 = vmatpush1.bf16.xpose.msra.mxu0 0
    %1136 = vmatprep.subr.bf16.mxu0 0
    %1137 = vmatpush1.bf16.xpose.msra.mxu0 0
    %1138 = vmatprep.subr.bf16.mxu0 0
    %1139 = vmatpush1.bf16.xpose.msra.mxu0 0
    %1140 = vmatprep.subr.bf16.mxu0 0
    %1141 = vmatpush1.bf16.xpose.msra.mxu0 0
    %1142 = vmatprep.subr.bf16.mxu0 0
    %1143 = vmatpush1.bf16.xpose.msra.mxu0 0
    %1144 = vmatprep.subr.bf16.mxu0 0
    %1145 = vmatpush1.bf16.xpose.msra.mxu0 0
    %1146 = vmatprep.subr.bf16.mxu0 0
    %1147 = vmatpush1.bf16.xpose.msra.mxu0 0
    %1148 = vmatprep.subr.bf16.mxu0 0
    %1149 = vmatpush1.bf16.xpose.msra.mxu0 0
    %1150 = vmatprep.mubr.bf16.mxu0 0
    %1151 = vmatmul.mubr.bf16.gmra.mrb[0].mxu0 %v1113
    %v1152 = vpop.f32.mrb[0].mxu0
    %v1153 = vadd.f32 0.0, %v1152
    %v1154 = vpop.f32.mrb[0].mxu0
    %v1155 = vpop.f32.mrb[0].mxu0
    %v1156 = vpop.f32.mrb[0].mxu0
    %1157 = vdwg.mxu0
    %v1158 = vsel %vm848, %v1153, -inf
    %1159 = vmax.xlane.f32.xlu0 %v1158
    %v1160 = vpop.xlane.xlu0 %1159
    %v1161 = vsub.f32 %v1153, %v1160
    %v1162 = vmul.f32 %v1161, 1.442695
    %v1163 = vpow.pop %v1162
    %v1164 = vsel %vm848, %v1163, 0.0
    %1165 = vadd.xlane.f32.xlu0 %v1164
    %v1166 = vpop.xlane.xlu0 %1165
    %v1167 = vpack.c.bf16 %v1163, %v1163
    %v1169 = vrot.slane %v807, 4
    %v1171 = vsel %vm848, %v1167, 0
    %v1174 = vsel %vm862, %v1169, 0
    %1176 = vmatprep.subr.bf16.mxu0 0
    %1177 = vmatpush1.bf16.msra.mxu0 %v1174
    %1178 = vmatprep.subr.bf16.mxu0 0
    %1179 = vmatpush1.bf16.msra.mxu0 0
    %1180 = vmatprep.subr.bf16.mxu0 0
    %1181 = vmatpush1.bf16.msra.mxu0 0
    %1182 = vmatprep.subr.bf16.mxu0 0
    %1183 = vmatpush1.bf16.msra.mxu0 0
    %1184 = vmatprep.subr.bf16.mxu0 0
    %1185 = vmatpush1.bf16.msra.mxu0 0
    %1186 = vmatprep.subr.bf16.mxu0 0
    %1187 = vmatpush1.bf16.msra.mxu0 0
    %1188 = vmatprep.subr.bf16.mxu0 0
    %1189 = vmatpush1.bf16.msra.mxu0 0
    %1190 = vmatprep.subr.bf16.mxu0 0
    %1191 = vmatpush1.bf16.msra.mxu0 0
    %1192 = vmatprep.subr.bf16.mxu0 0
    %1193 = vmatpush1.bf16.msra.mxu0 0
    %1194 = vmatprep.subr.bf16.mxu0 0
    %1195 = vmatpush1.bf16.msra.mxu0 0
    %1196 = vmatprep.subr.bf16.mxu0 0
    %1197 = vmatpush1.bf16.msra.mxu0 0
    %1198 = vmatprep.subr.bf16.mxu0 0
    %1199 = vmatpush1.bf16.msra.mxu0 0
    %1200 = vmatprep.subr.bf16.mxu0 0
    %1201 = vmatpush1.bf16.msra.mxu0 0
    %1202 = vmatprep.subr.bf16.mxu0 0
    %1203 = vmatpush1.bf16.msra.mxu0 0
    %1204 = vmatprep.subr.bf16.mxu0 0
    %1205 = vmatpush1.bf16.msra.mxu0 0
    %1206 = vmatprep.subr.bf16.mxu0 0
    %1207 = vmatpush1.bf16.msra.mxu0 0
    %1208 = vmatprep.mubr.bf16.mxu0 0
    %1209 = vmatmul.mubr.bf16.gmra.mrb[0].mxu0 %v1171
    %v1210 = vpop.f32.mrb[0].mxu0
    %v1211 = vadd.f32 0.0, %v1210
    %v1212 = vpop.f32.mrb[0].mxu0
    %v1213 = vpop.f32.mrb[0].mxu0
    %v1214 = vpop.f32.mrb[0].mxu0
    %1215 = vdwg.mxu0
    %v1216 = vrcp.pop %v1166
    %v1217 = vmul.f32 %v1211, %v1216
    %v1218 = vld [vmem:[#allocation7] sm:$0x1f]
    %v1219 = vld [vmem:[#allocation7 + $0x8] sm:$0x1f]
    %v1220 = vadd.f32 %v91, %v907
    %v1221 = vadd.f32 %v92, %v1005
    %v1222 = vadd.f32 %v93, %v1111
    %v1223 = vadd.f32 %v94, %v1217
    %v1224 = vadd.f32 %v1220, %v1221
    %1225 = vadd.xlane.f32.xlu0 %v1224
    %v1226 = vpop.xlane.xlu0 %1225
    %v1227 = vadd.f32 %v1222, %v1223
    %1228 = vadd.xlane.f32.xlu0 %v1227
    %v1229 = vpop.xlane.xlu0 %1228
    %v1230 = vrcp.pop 256.0
    %v1231 = vmul.f32 %v1226, %v1230
    %v1232 = vmul.f32 %v1229, %v1230
    %v1233 = vsub.f32 %v1220, %v1231
    %v1234 = vsub.f32 %v1221, %v1231
    %v1235 = vsub.f32 %v1222, %v1232
    %v1236 = vsub.f32 %v1223, %v1232
    %v1237 = vmul.f32 %v1233, %v1233
    %v1238 = vmul.f32 %v1234, %v1234
    %v1239 = vmul.f32 %v1235, %v1235
    %v1240 = vmul.f32 %v1236, %v1236
    %v1241 = vadd.f32 %v1237, %v1238
    %1242 = vadd.xlane.f32.xlu0 %v1241
    %v1243 = vpop.xlane.xlu0 %1242
    %v1244 = vadd.f32 %v1239, %v1240
    %1245 = vadd.xlane.f32.xlu0 %v1244
    %v1246 = vpop.xlane.xlu0 %1245
    %v1247 = vmul.f32 %v1243, %v1230
    %v1248 = vmul.f32 %v1246, %v1230
    %v1249 = vadd.f32 %v1247, 1e-05
    %v1250 = vadd.f32 %v1248, 1e-05
    %v1251 = vrsqrt.pop %v1249
    %v1252 = vrsqrt.pop %v1250
    %v1253 = vmul.f32 %v1233, %v1251
    %v1254 = vmul.f32 %v1234, %v1251
    %v1255 = vmul.f32 %v1235, %v1252
    %v1256 = vmul.f32 %v1236, %v1252
    %v1257 = vlaneseq
    %v1258 = vshrl.u32 %v1257, 7
    %v1259 = vsub.s32 0, %v1258
    %v1260 = vrot.slane %v1218, %v1259
    %v1261 = vlaneseq
    %v1262 = vshrl.u32 %v1261, 7
    %v1263 = vsub.s32 0, %v1262
    %v1264 = vrot.slane %v1219, %v1263
    %v1265 = vmul.f32 %v1253, %v1260
    %v1266 = vmul.f32 %v1254, %v1264
    %v1267 = vmul.f32 %v1255, %v1260
    %v1268 = vmul.f32 %v1256, %v1264
    %v1269 = vlaneseq
    %v1270 = vshrl.u32 %v1269, 7
    %v1271 = vsub.s32 1, %v1270
    %v1272 = vrot.slane %v1218, %v1271
    %v1273 = vlaneseq
    %v1274 = vshrl.u32 %v1273, 7
    %v1275 = vsub.s32 1, %v1274
    %v1276 = vrot.slane %v1219, %v1275
    %v1277 = vadd.f32 %v1265, %v1272
    %v1278 = vadd.f32 %v1266, %v1276
    %v1279 = vadd.f32 %v1267, %v1272
    %v1280 = vadd.f32 %v1268, %v1276
    %v1281 = vpack.c.bf16 %v1279, %v1277
    %v1282 = vpack.c.bf16 %v1280, %v1278
    %v1283 = vld [vmem:[#allocation8] sm:$0xff]
    %v1284 = vld [vmem:[#allocation8 + $0x8] sm:$0xff]
    %v1285 = vld [vmem:[#allocation8 + $0x10] sm:$0xff]
    %v1286 = vld [vmem:[#allocation8 + $0x18] sm:$0xff]
    %v1287 = vld [vmem:[#allocation8 + $0x20] sm:$0xff]
    %v1288 = vld [vmem:[#allocation8 + $0x28] sm:$0xff]
    %v1289 = vld [vmem:[#allocation8 + $0x30] sm:$0xff]
    %v1290 = vld [vmem:[#allocation8 + $0x38] sm:$0xff]
    %v1291 = vld [vmem:[#allocation8 + $0x40] sm:$0xff]
    %v1292 = vld [vmem:[#allocation8 + $0x48] sm:$0xff]
    %v1293 = vld [vmem:[#allocation8 + $0x50] sm:$0xff]
    %v1294 = vld [vmem:[#allocation8 + $0x58] sm:$0xff]
    %v1295 = vld [vmem:[#allocation8 + $0x60] sm:$0xff]
    %v1296 = vld [vmem:[#allocation8 + $0x68] sm:$0xff]
    %v1297 = vld [vmem:[#allocation8 + $0x70] sm:$0xff]
    %v1298 = vld [vmem:[#allocation8 + $0x78] sm:$0xff]
    %v1299 = vld [vmem:[#allocation8 + $0x80] sm:$0xff]
    %v1300 = vld [vmem:[#allocation8 + $0x88] sm:$0xff]
    %v1301 = vld [vmem:[#allocation8 + $0x90] sm:$0xff]
    %v1302 = vld [vmem:[#allocation8 + $0x98] sm:$0xff]
    %v1303 = vld [vmem:[#allocation8 + $0xa0] sm:$0xff]
    %v1304 = vld [vmem:[#allocation8 + $0xa8] sm:$0xff]
    %v1305 = vld [vmem:[#allocation8 + $0xb0] sm:$0xff]
    %v1306 = vld [vmem:[#allocation8 + $0xb8] sm:$0xff]
    %v1307 = vld [vmem:[#allocation8 + $0xc0] sm:$0xff]
    %v1308 = vld [vmem:[#allocation8 + $0xc8] sm:$0xff]
    %v1309 = vld [vmem:[#allocation8 + $0xd0] sm:$0xff]
    %v1310 = vld [vmem:[#allocation8 + $0xd8] sm:$0xff]
    %v1311 = vld [vmem:[#allocation8 + $0xe0] sm:$0xff]
    %v1312 = vld [vmem:[#allocation8 + $0xe8] sm:$0xff]
    %v1313 = vld [vmem:[#allocation8 + $0xf0] sm:$0xff]
    %v1314 = vld [vmem:[#allocation8 + $0xf8] sm:$0xff]
    %v1315 = vld [vmem:[#allocation8 + $0x100] sm:$0xff]
    %v1316 = vld [vmem:[#allocation8 + $0x108] sm:$0xff]
    %v1317 = vld [vmem:[#allocation8 + $0x110] sm:$0xff]
    %v1318 = vld [vmem:[#allocation8 + $0x118] sm:$0xff]
    %v1319 = vld [vmem:[#allocation8 + $0x120] sm:$0xff]
    %v1320 = vld [vmem:[#allocation8 + $0x128] sm:$0xff]
    %v1321 = vld [vmem:[#allocation8 + $0x130] sm:$0xff]
    %v1322 = vld [vmem:[#allocation8 + $0x138] sm:$0xff]
    %v1323 = vld [vmem:[#allocation8 + $0x140] sm:$0xff]
    %v1324 = vld [vmem:[#allocation8 + $0x148] sm:$0xff]
    %v1325 = vld [vmem:[#allocation8 + $0x150] sm:$0xff]
    %v1326 = vld [vmem:[#allocation8 + $0x158] sm:$0xff]
    %v1327 = vld [vmem:[#allocation8 + $0x160] sm:$0xff]
    %v1328 = vld [vmem:[#allocation8 + $0x168] sm:$0xff]
    %v1329 = vld [vmem:[#allocation8 + $0x170] sm:$0xff]
    %v1330 = vld [vmem:[#allocation8 + $0x178] sm:$0xff]
    %v1331 = vld [vmem:[#allocation8 + $0x180] sm:$0xff]
    %v1332 = vld [vmem:[#allocation8 + $0x188] sm:$0xff]
    %v1333 = vld [vmem:[#allocation8 + $0x190] sm:$0xff]
    %v1334 = vld [vmem:[#allocation8 + $0x198] sm:$0xff]
    %v1335 = vld [vmem:[#allocation8 + $0x1a0] sm:$0xff]
    %v1336 = vld [vmem:[#allocation8 + $0x1a8] sm:$0xff]
    %v1337 = vld [vmem:[#allocation8 + $0x1b0] sm:$0xff]
    %v1338 = vld [vmem:[#allocation8 + $0x1b8] sm:$0xff]
    %v1339 = vld [vmem:[#allocation8 + $0x1c0] sm:$0xff]
    %v1340 = vld [vmem:[#allocation8 + $0x1c8] sm:$0xff]
    %v1341 = vld [vmem:[#allocation8 + $0x1d0] sm:$0xff]
    %v1342 = vld [vmem:[#allocation8 + $0x1d8] sm:$0xff]
    %v1343 = vld [vmem:[#allocation8 + $0x1e0] sm:$0xff]
    %v1344 = vld [vmem:[#allocation8 + $0x1e8] sm:$0xff]
    %v1345 = vld [vmem:[#allocation8 + $0x1f0] sm:$0xff]
    %v1346 = vld [vmem:[#allocation8 + $0x1f8] sm:$0xff]
    %v1347 = vld [vmem:[%s3] sm:$0xf]
    %v1349 = vlaneseq
    %v1350 = vshrl.u32 %v1349, 7
    %v1351 = vsub.s32 0, %v1350
    %v1352 = vrot.slane %v1347, %v1351
    %v1353 = vlaneseq
    %v1354 = vshrl.u32 %v1353, 7
    %v1355 = vsub.s32 1, %v1354
    %v1356 = vrot.slane %v1347, %v1355
    %v1357 = vlaneseq
    %v1358 = vshrl.u32 %v1357, 7
    %v1359 = vsub.s32 2, %v1358
    %v1360 = vrot.slane %v1347, %v1359
    %v1361 = vlaneseq
    %v1362 = vshrl.u32 %v1361, 7
    %v1363 = vsub.s32 3, %v1362
    %v1364 = vrot.slane %v1347, %v1363
    %v1433 = vunpack.c.l.b16 %v1283
    %v1434 = vunpack.c.h.b16 %v1283
    %v1435 = vunpack.c.l.b16 %v1284
    %v1436 = vunpack.c.h.b16 %v1284
    %v1437 = vunpack.c.l.b16 %v1285
    %v1438 = vunpack.c.h.b16 %v1285
    %v1439 = vunpack.c.l.b16 %v1286
    %v1440 = vunpack.c.h.b16 %v1286
    %v1441 = vunpack.c.l.b16 %v1287
    %v1442 = vunpack.c.h.b16 %v1287
    %v1443 = vunpack.c.l.b16 %v1288
    %v1444 = vunpack.c.h.b16 %v1288
    %v1445 = vunpack.c.l.b16 %v1289
    %v1446 = vunpack.c.h.b16 %v1289
    %v1447 = vunpack.c.l.b16 %v1290
    %v1448 = vunpack.c.h.b16 %v1290
    %v1449 = vunpack.c.l.b16 %v1291
    %v1450 = vunpack.c.h.b16 %v1291
    %v1451 = vunpack.c.l.b16 %v1292
    %v1452 = vunpack.c.h.b16 %v1292
    %v1453 = vunpack.c.l.b16 %v1293
    %v1454 = vunpack.c.h.b16 %v1293
    %v1455 = vunpack.c.l.b16 %v1294
    %v1456 = vunpack.c.h.b16 %v1294
    %v1457 = vunpack.c.l.b16 %v1295
    %v1458 = vunpack.c.h.b16 %v1295
    %v1459 = vunpack.c.l.b16 %v1296
    %v1460 = vunpack.c.h.b16 %v1296
    %v1461 = vunpack.c.l.b16 %v1297
    %v1462 = vunpack.c.h.b16 %v1297
    %v1463 = vunpack.c.l.b16 %v1298
    %v1464 = vunpack.c.h.b16 %v1298
    %v1465 = vunpack.c.l.b16 %v1299
    %v1466 = vunpack.c.h.b16 %v1299
    %v1467 = vunpack.c.l.b16 %v1300
    %v1468 = vunpack.c.h.b16 %v1300
    %v1469 = vunpack.c.l.b16 %v1301
    %v1470 = vunpack.c.h.b16 %v1301
    %v1471 = vunpack.c.l.b16 %v1302
    %v1472 = vunpack.c.h.b16 %v1302
    %v1473 = vunpack.c.l.b16 %v1303
    %v1474 = vunpack.c.h.b16 %v1303
    %v1475 = vunpack.c.l.b16 %v1304
    %v1476 = vunpack.c.h.b16 %v1304
    %v1477 = vunpack.c.l.b16 %v1305
    %v1478 = vunpack.c.h.b16 %v1305
    %v1479 = vunpack.c.l.b16 %v1306
    %v1480 = vunpack.c.h.b16 %v1306
    %v1481 = vunpack.c.l.b16 %v1307
    %v1482 = vunpack.c.h.b16 %v1307
    %v1483 = vunpack.c.l.b16 %v1308
    %v1484 = vunpack.c.h.b16 %v1308
    %v1485 = vunpack.c.l.b16 %v1309
    %v1486 = vunpack.c.h.b16 %v1309
    %v1487 = vunpack.c.l.b16 %v1310
    %v1488 = vunpack.c.h.b16 %v1310
    %v1489 = vunpack.c.l.b16 %v1311
    %v1490 = vunpack.c.h.b16 %v1311
    %v1491 = vunpack.c.l.b16 %v1312
    %v1492 = vunpack.c.h.b16 %v1312
    %v1493 = vunpack.c.l.b16 %v1313
    %v1494 = vunpack.c.h.b16 %v1313
    %v1495 = vunpack.c.l.b16 %v1314
    %v1496 = vunpack.c.h.b16 %v1314
    %v1497 = vunpack.c.l.b16 %v1315
    %v1498 = vunpack.c.h.b16 %v1315
    %v1499 = vunpack.c.l.b16 %v1316
    %v1500 = vunpack.c.h.b16 %v1316
    %v1501 = vunpack.c.l.b16 %v1317
    %v1502 = vunpack.c.h.b16 %v1317
    %v1503 = vunpack.c.l.b16 %v1318
    %v1504 = vunpack.c.h.b16 %v1318
    %v1505 = vunpack.c.l.b16 %v1319
    %v1506 = vunpack.c.h.b16 %v1319
    %v1507 = vunpack.c.l.b16 %v1320
    %v1508 = vunpack.c.h.b16 %v1320
    %v1509 = vunpack.c.l.b16 %v1321
    %v1510 = vunpack.c.h.b16 %v1321
    %v1511 = vunpack.c.l.b16 %v1322
    %v1512 = vunpack.c.h.b16 %v1322
    %v1513 = vunpack.c.l.b16 %v1323
    %v1514 = vunpack.c.h.b16 %v1323
    %v1515 = vunpack.c.l.b16 %v1324
    %v1516 = vunpack.c.h.b16 %v1324
    %v1517 = vunpack.c.l.b16 %v1325
    %v1518 = vunpack.c.h.b16 %v1325
    %v1519 = vunpack.c.l.b16 %v1326
    %v1520 = vunpack.c.h.b16 %v1326
    %v1521 = vunpack.c.l.b16 %v1327
    %v1522 = vunpack.c.h.b16 %v1327
    %v1523 = vunpack.c.l.b16 %v1328
    %v1524 = vunpack.c.h.b16 %v1328
    %v1525 = vunpack.c.l.b16 %v1329
    %v1526 = vunpack.c.h.b16 %v1329
    %v1527 = vunpack.c.l.b16 %v1330
    %v1528 = vunpack.c.h.b16 %v1330
    %v1529 = vunpack.c.l.b16 %v1331
    %v1530 = vunpack.c.h.b16 %v1331
    %v1531 = vunpack.c.l.b16 %v1332
    %v1532 = vunpack.c.h.b16 %v1332
    %v1533 = vunpack.c.l.b16 %v1333
    %v1534 = vunpack.c.h.b16 %v1333
    %v1535 = vunpack.c.l.b16 %v1334
    %v1536 = vunpack.c.h.b16 %v1334
    %v1537 = vunpack.c.l.b16 %v1335
    %v1538 = vunpack.c.h.b16 %v1335
    %v1539 = vunpack.c.l.b16 %v1336
    %v1540 = vunpack.c.h.b16 %v1336
    %v1541 = vunpack.c.l.b16 %v1337
    %v1542 = vunpack.c.h.b16 %v1337
    %v1543 = vunpack.c.l.b16 %v1338
    %v1544 = vunpack.c.h.b16 %v1338
    %v1545 = vunpack.c.l.b16 %v1339
    %v1546 = vunpack.c.h.b16 %v1339
    %v1547 = vunpack.c.l.b16 %v1340
    %v1548 = vunpack.c.h.b16 %v1340
    %v1549 = vunpack.c.l.b16 %v1341
    %v1550 = vunpack.c.h.b16 %v1341
    %v1551 = vunpack.c.l.b16 %v1342
    %v1552 = vunpack.c.h.b16 %v1342
    %v1553 = vunpack.c.l.b16 %v1343
    %v1554 = vunpack.c.h.b16 %v1343
    %v1555 = vunpack.c.l.b16 %v1344
    %v1556 = vunpack.c.h.b16 %v1344
    %v1557 = vunpack.c.l.b16 %v1345
    %v1558 = vunpack.c.h.b16 %v1345
    %v1559 = vunpack.c.l.b16 %v1346
    %v1560 = vunpack.c.h.b16 %v1346
    %v1561 = vpack.c.b16 %v1437, %v1433
    %v1562 = vpack.c.b16 %v1438, %v1434
    %v1563 = vpack.c.b16 %v1439, %v1435
    %v1564 = vpack.c.b16 %v1440, %v1436
    %v1565 = vpack.c.b16 %v1445, %v1441
    %v1566 = vpack.c.b16 %v1446, %v1442
    %v1567 = vpack.c.b16 %v1447, %v1443
    %v1568 = vpack.c.b16 %v1448, %v1444
    %v1569 = vpack.c.b16 %v1453, %v1449
    %v1570 = vpack.c.b16 %v1454, %v1450
    %v1571 = vpack.c.b16 %v1455, %v1451
    %v1572 = vpack.c.b16 %v1456, %v1452
    %v1573 = vpack.c.b16 %v1461, %v1457
    %v1574 = vpack.c.b16 %v1462, %v1458
    %v1575 = vpack.c.b16 %v1463, %v1459
    %v1576 = vpack.c.b16 %v1464, %v1460
    %v1577 = vpack.c.b16 %v1469, %v1465
    %v1578 = vpack.c.b16 %v1470, %v1466
    %v1579 = vpack.c.b16 %v1471, %v1467
    %v1580 = vpack.c.b16 %v1472, %v1468
    %v1581 = vpack.c.b16 %v1477, %v1473
    %v1582 = vpack.c.b16 %v1478, %v1474
    %v1583 = vpack.c.b16 %v1479, %v1475
    %v1584 = vpack.c.b16 %v1480, %v1476
    %v1585 = vpack.c.b16 %v1485, %v1481
    %v1586 = vpack.c.b16 %v1486, %v1482
    %v1587 = vpack.c.b16 %v1487, %v1483
    %v1588 = vpack.c.b16 %v1488, %v1484
    %v1589 = vpack.c.b16 %v1493, %v1489
    %v1590 = vpack.c.b16 %v1494, %v1490
    %v1591 = vpack.c.b16 %v1495, %v1491
    %v1592 = vpack.c.b16 %v1496, %v1492
    %v1593 = vpack.c.b16 %v1501, %v1497
    %v1594 = vpack.c.b16 %v1502, %v1498
    %v1595 = vpack.c.b16 %v1503, %v1499
    %v1596 = vpack.c.b16 %v1504, %v1500
    %v1597 = vpack.c.b16 %v1509, %v1505
    %v1598 = vpack.c.b16 %v1510, %v1506
    %v1599 = vpack.c.b16 %v1511, %v1507
    %v1600 = vpack.c.b16 %v1512, %v1508
    %v1601 = vpack.c.b16 %v1517, %v1513
    %v1602 = vpack.c.b16 %v1518, %v1514
    %v1603 = vpack.c.b16 %v1519, %v1515
    %v1604 = vpack.c.b16 %v1520, %v1516
    %v1605 = vpack.c.b16 %v1525, %v1521
    %v1606 = vpack.c.b16 %v1526, %v1522
    %v1607 = vpack.c.b16 %v1527, %v1523
    %v1608 = vpack.c.b16 %v1528, %v1524
    %v1609 = vpack.c.b16 %v1533, %v1529
    %v1610 = vpack.c.b16 %v1534, %v1530
    %v1611 = vpack.c.b16 %v1535, %v1531
    %v1612 = vpack.c.b16 %v1536, %v1532
    %v1613 = vpack.c.b16 %v1541, %v1537
    %v1614 = vpack.c.b16 %v1542, %v1538
    %v1615 = vpack.c.b16 %v1543, %v1539
    %v1616 = vpack.c.b16 %v1544, %v1540
    %v1617 = vpack.c.b16 %v1549, %v1545
    %v1618 = vpack.c.b16 %v1550, %v1546
    %v1619 = vpack.c.b16 %v1551, %v1547
    %v1620 = vpack.c.b16 %v1552, %v1548
    %v1621 = vpack.c.b16 %v1557, %v1553
    %v1622 = vpack.c.b16 %v1558, %v1554
    %v1623 = vpack.c.b16 %v1559, %v1555
    %v1624 = vpack.c.b16 %v1560, %v1556
    %1689 = vmatprep.subr.bf16.mxu0 %v1562
    %1690 = vmatpush1.bf16.msra.mxu0 %v1561
    %1691 = vmatprep.subr.bf16.mxu0 %v1566
    %1692 = vmatpush1.bf16.msra.mxu0 %v1565
    %1693 = vmatprep.subr.bf16.mxu0 %v1570
    %1694 = vmatpush1.bf16.msra.mxu0 %v1569
    %1695 = vmatprep.subr.bf16.mxu0 %v1574
    %1696 = vmatpush1.bf16.msra.mxu0 %v1573
    %1697 = vmatprep.subr.bf16.mxu0 %v1578
    %1698 = vmatpush1.bf16.msra.mxu0 %v1577
    %1699 = vmatprep.subr.bf16.mxu0 %v1582
    %1700 = vmatpush1.bf16.msra.mxu0 %v1581
    %1701 = vmatprep.subr.bf16.mxu0 %v1586
    %1702 = vmatpush1.bf16.msra.mxu0 %v1585
    %1703 = vmatprep.subr.bf16.mxu0 %v1590
    %1704 = vmatpush1.bf16.msra.mxu0 %v1589
    %1705 = vmatprep.subr.bf16.mxu0 %v1594
    %1706 = vmatpush1.bf16.msra.mxu0 %v1593
    %1707 = vmatprep.subr.bf16.mxu0 %v1598
    %1708 = vmatpush1.bf16.msra.mxu0 %v1597
    %1709 = vmatprep.subr.bf16.mxu0 %v1602
    %1710 = vmatpush1.bf16.msra.mxu0 %v1601
    %1711 = vmatprep.subr.bf16.mxu0 %v1606
    %1712 = vmatpush1.bf16.msra.mxu0 %v1605
    %1713 = vmatprep.subr.bf16.mxu0 %v1610
    %1714 = vmatpush1.bf16.msra.mxu0 %v1609
    %1715 = vmatprep.subr.bf16.mxu0 %v1614
    %1716 = vmatpush1.bf16.msra.mxu0 %v1613
    %1717 = vmatprep.subr.bf16.mxu0 %v1618
    %1718 = vmatpush1.bf16.msra.mxu0 %v1617
    %1719 = vmatprep.subr.bf16.mxu0 %v1622
    %1720 = vmatpush1.bf16.msra.mxu0 %v1621
    %1721 = vmatprep.mubr.bf16.mxu0 %v1282
    %1722 = vmatmul.mubr.bf16.gmra.mrb[0].mxu0 %v1281
    %v1723 = vpop.f32.mrb[0].mxu0
    %v1724 = vadd.f32 %v1352, %v1723
    %v1725 = vpop.f32.mrb[0].mxu0
    %v1726 = vadd.f32 %v1356, %v1725
    %v1727 = vpop.f32.mrb[0].mxu0
    %v1728 = vadd.f32 %v1352, %v1727
    %v1729 = vpop.f32.mrb[0].mxu0
    %v1730 = vadd.f32 %v1356, %v1729
    %1731 = vdwg.mxu0
    %1732 = vmatprep.subr.bf16.mxu0 %v1564
    %1733 = vmatpush1.bf16.msra.mxu0 %v1563
    %1734 = vmatprep.subr.bf16.mxu0 %v1568
    %1735 = vmatpush1.bf16.msra.mxu0 %v1567
    %1736 = vmatprep.subr.bf16.mxu0 %v1572
    %1737 = vmatpush1.bf16.msra.mxu0 %v1571
    %1738 = vmatprep.subr.bf16.mxu0 %v1576
    %1739 = vmatpush1.bf16.msra.mxu0 %v1575
    %1740 = vmatprep.subr.bf16.mxu0 %v1580
    %1741 = vmatpush1.bf16.msra.mxu0 %v1579
    %1742 = vmatprep.subr.bf16.mxu0 %v1584
    %1743 = vmatpush1.bf16.msra.mxu0 %v1583
    %1744 = vmatprep.subr.bf16.mxu0 %v1588
    %1745 = vmatpush1.bf16.msra.mxu0 %v1587
    %1746 = vmatprep.subr.bf16.mxu0 %v1592
    %1747 = vmatpush1.bf16.msra.mxu0 %v1591
    %1748 = vmatprep.subr.bf16.mxu0 %v1596
    %1749 = vmatpush1.bf16.msra.mxu0 %v1595
    %1750 = vmatprep.subr.bf16.mxu0 %v1600
    %1751 = vmatpush1.bf16.msra.mxu0 %v1599
    %1752 = vmatprep.subr.bf16.mxu0 %v1604
    %1753 = vmatpush1.bf16.msra.mxu0 %v1603
    %1754 = vmatprep.subr.bf16.mxu0 %v1608
    %1755 = vmatpush1.bf16.msra.mxu0 %v1607
    %1756 = vmatprep.subr.bf16.mxu0 %v1612
    %1757 = vmatpush1.bf16.msra.mxu0 %v1611
    %1758 = vmatprep.subr.bf16.mxu0 %v1616
    %1759 = vmatpush1.bf16.msra.mxu0 %v1615
    %1760 = vmatprep.subr.bf16.mxu0 %v1620
    %1761 = vmatpush1.bf16.msra.mxu0 %v1619
    %1762 = vmatprep.subr.bf16.mxu0 %v1624
    %1763 = vmatpush1.bf16.msra.mxu0 %v1623
    %1764 = vmatprep.mubr.bf16.mxu0 %v1282
    %1765 = vmatmul.mubr.bf16.gmra.mrb[0].mxu0 %v1281
    %v1766 = vpop.f32.mrb[0].mxu0
    %v1767 = vadd.f32 %v1360, %v1766
    %v1768 = vpop.f32.mrb[0].mxu0
    %v1769 = vadd.f32 %v1364, %v1768
    %v1770 = vpop.f32.mrb[0].mxu0
    %v1771 = vadd.f32 %v1360, %v1770
    %v1772 = vpop.f32.mrb[0].mxu0
    %v1773 = vadd.f32 %v1364, %v1772
    %1774 = vdwg.mxu0
    %v1775 = vmul.f32 %v1724, 0.5
    %v1776 = vmul.f32 %v1726, 0.5
    %v1777 = vmul.f32 %v1767, 0.5
    %v1778 = vmul.f32 %v1769, 0.5
    %v1779 = vmul.f32 %v1728, 0.5
    %v1780 = vmul.f32 %v1730, 0.5
    %v1781 = vmul.f32 %v1771, 0.5
    %v1782 = vmul.f32 %v1773, 0.5
    %v1783 = vmul.f32 %v1724, 0.70710677
    %v1784 = vmul.f32 %v1726, 0.70710677
    %v1785 = vmul.f32 %v1767, 0.70710677
    %v1786 = vmul.f32 %v1769, 0.70710677
    %v1787 = vmul.f32 %v1728, 0.70710677
    %v1788 = vmul.f32 %v1730, 0.70710677
    %v1789 = vmul.f32 %v1771, 0.70710677
    %v1790 = vmul.f32 %v1773, 0.70710677
    %v1791 = verf.f32.pop %v1783
    %v1792 = verf.f32.pop %v1784
    %v1793 = verf.f32.pop %v1785
    %v1794 = verf.f32.pop %v1786
    %v1795 = verf.f32.pop %v1787
    %v1796 = verf.f32.pop %v1788
    %v1797 = verf.f32.pop %v1789
    %v1798 = verf.f32.pop %v1790
    %v1799 = vadd.f32 %v1791, 1.0
    %v1800 = vadd.f32 %v1792, 1.0
    %v1801 = vadd.f32 %v1793, 1.0
    %v1802 = vadd.f32 %v1794, 1.0
    %v1803 = vadd.f32 %v1795, 1.0
    %v1804 = vadd.f32 %v1796, 1.0
    %v1805 = vadd.f32 %v1797, 1.0
    %v1806 = vadd.f32 %v1798, 1.0
    %v1807 = vmul.f32 %v1775, %v1799
    %v1808 = vmul.f32 %v1776, %v1800
    %v1809 = vmul.f32 %v1777, %v1801
    %v1810 = vmul.f32 %v1778, %v1802
    %v1811 = vmul.f32 %v1779, %v1803
    %v1812 = vmul.f32 %v1780, %v1804
    %v1813 = vmul.f32 %v1781, %v1805
    %v1814 = vmul.f32 %v1782, %v1806
    %v1815 = vpack.c.bf16 %v1811, %v1807
    %v1816 = vpack.c.bf16 %v1812, %v1808
    %v1817 = vpack.c.bf16 %v1813, %v1809
    %v1818 = vpack.c.bf16 %v1814, %v1810
    %v1819 = vld [vmem:[#allocation10] sm:$0xff]
    %v1820 = vld [vmem:[#allocation10 + $0x8] sm:$0xff]
    %v1821 = vld [vmem:[#allocation10 + $0x10] sm:$0xff]
    %v1822 = vld [vmem:[#allocation10 + $0x18] sm:$0xff]
    %v1823 = vld [vmem:[#allocation10 + $0x20] sm:$0xff]
    %v1824 = vld [vmem:[#allocation10 + $0x28] sm:$0xff]
    %v1825 = vld [vmem:[#allocation10 + $0x30] sm:$0xff]
    %v1826 = vld [vmem:[#allocation10 + $0x38] sm:$0xff]
    %v1827 = vld [vmem:[#allocation10 + $0x40] sm:$0xff]
    %v1828 = vld [vmem:[#allocation10 + $0x48] sm:$0xff]
    %v1829 = vld [vmem:[#allocation10 + $0x50] sm:$0xff]
    %v1830 = vld [vmem:[#allocation10 + $0x58] sm:$0xff]
    %v1831 = vld [vmem:[#allocation10 + $0x60] sm:$0xff]
    %v1832 = vld [vmem:[#allocation10 + $0x68] sm:$0xff]
    %v1833 = vld [vmem:[#allocation10 + $0x70] sm:$0xff]
    %v1834 = vld [vmem:[#allocation10 + $0x78] sm:$0xff]
    %v1835 = vld [vmem:[#allocation10 + $0x80] sm:$0xff]
    %v1836 = vld [vmem:[#allocation10 + $0x88] sm:$0xff]
    %v1837 = vld [vmem:[#allocation10 + $0x90] sm:$0xff]
    %v1838 = vld [vmem:[#allocation10 + $0x98] sm:$0xff]
    %v1839 = vld [vmem:[#allocation10 + $0xa0] sm:$0xff]
    %v1840 = vld [vmem:[#allocation10 + $0xa8] sm:$0xff]
    %v1841 = vld [vmem:[#allocation10 + $0xb0] sm:$0xff]
    %v1842 = vld [vmem:[#allocation10 + $0xb8] sm:$0xff]
    %v1843 = vld [vmem:[#allocation10 + $0xc0] sm:$0xff]
    %v1844 = vld [vmem:[#allocation10 + $0xc8] sm:$0xff]
    %v1845 = vld [vmem:[#allocation10 + $0xd0] sm:$0xff]
    %v1846 = vld [vmem:[#allocation10 + $0xd8] sm:$0xff]
    %v1847 = vld [vmem:[#allocation10 + $0xe0] sm:$0xff]
    %v1848 = vld [vmem:[#allocation10 + $0xe8] sm:$0xff]
    %v1849 = vld [vmem:[#allocation10 + $0xf0] sm:$0xff]
    %v1850 = vld [vmem:[#allocation10 + $0xf8] sm:$0xff]
    %v1851 = vld [vmem:[#allocation10 + $0x100] sm:$0xff]
    %v1852 = vld [vmem:[#allocation10 + $0x108] sm:$0xff]
    %v1853 = vld [vmem:[#allocation10 + $0x110] sm:$0xff]
    %v1854 = vld [vmem:[#allocation10 + $0x118] sm:$0xff]
    %v1855 = vld [vmem:[#allocation10 + $0x120] sm:$0xff]
    %v1856 = vld [vmem:[#allocation10 + $0x128] sm:$0xff]
    %v1857 = vld [vmem:[#allocation10 + $0x130] sm:$0xff]
    %v1858 = vld [vmem:[#allocation10 + $0x138] sm:$0xff]
    %v1859 = vld [vmem:[#allocation10 + $0x140] sm:$0xff]
    %v1860 = vld [vmem:[#allocation10 + $0x148] sm:$0xff]
    %v1861 = vld [vmem:[#allocation10 + $0x150] sm:$0xff]
    %v1862 = vld [vmem:[#allocation10 + $0x158] sm:$0xff]
    %v1863 = vld [vmem:[#allocation10 + $0x160] sm:$0xff]
    %v1864 = vld [vmem:[#allocation10 + $0x168] sm:$0xff]
    %v1865 = vld [vmem:[#allocation10 + $0x170] sm:$0xff]
    %v1866 = vld [vmem:[#allocation10 + $0x178] sm:$0xff]
    %v1867 = vld [vmem:[#allocation10 + $0x180] sm:$0xff]
    %v1868 = vld [vmem:[#allocation10 + $0x188] sm:$0xff]
    %v1869 = vld [vmem:[#allocation10 + $0x190] sm:$0xff]
    %v1870 = vld [vmem:[#allocation10 + $0x198] sm:$0xff]
    %v1871 = vld [vmem:[#allocation10 + $0x1a0] sm:$0xff]
    %v1872 = vld [vmem:[#allocation10 + $0x1a8] sm:$0xff]
    %v1873 = vld [vmem:[#allocation10 + $0x1b0] sm:$0xff]
    %v1874 = vld [vmem:[#allocation10 + $0x1b8] sm:$0xff]
    %v1875 = vld [vmem:[#allocation10 + $0x1c0] sm:$0xff]
    %v1876 = vld [vmem:[#allocation10 + $0x1c8] sm:$0xff]
    %v1877 = vld [vmem:[#allocation10 + $0x1d0] sm:$0xff]
    %v1878 = vld [vmem:[#allocation10 + $0x1d8] sm:$0xff]
    %v1879 = vld [vmem:[#allocation10 + $0x1e0] sm:$0xff]
    %v1880 = vld [vmem:[#allocation10 + $0x1e8] sm:$0xff]
    %v1881 = vld [vmem:[#allocation10 + $0x1f0] sm:$0xff]
    %v1882 = vld [vmem:[#allocation10 + $0x1f8] sm:$0xff]
    %v1883 = vlaneseq
    %v1884 = vshrl.u32 %v1883, 7
    %v1885 = vsub.s32 4, %v1884
    %v1886 = vrot.slane %v1218, %v1885
    %v1887 = vlaneseq
    %v1888 = vshrl.u32 %v1887, 7
    %v1889 = vsub.s32 4, %v1888
    %v1890 = vrot.slane %v1219, %v1889
    %v1955 = vunpack.c.l.b16 %v1819
    %v1956 = vunpack.c.h.b16 %v1819
    %v1957 = vunpack.c.l.b16 %v1820
    %v1958 = vunpack.c.h.b16 %v1820
    %v1959 = vunpack.c.l.b16 %v1821
    %v1960 = vunpack.c.h.b16 %v1821
    %v1961 = vunpack.c.l.b16 %v1822
    %v1962 = vunpack.c.h.b16 %v1822
    %v1963 = vunpack.c.l.b16 %v1823
    %v1964 = vunpack.c.h.b16 %v1823
    %v1965 = vunpack.c.l.b16 %v1824
    %v1966 = vunpack.c.h.b16 %v1824
    %v1967 = vunpack.c.l.b16 %v1825
    %v1968 = vunpack.c.h.b16 %v1825
    %v1969 = vunpack.c.l.b16 %v1826
    %v1970 = vunpack.c.h.b16 %v1826
    %v1971 = vunpack.c.l.b16 %v1827
    %v1972 = vunpack.c.h.b16 %v1827
    %v1973 = vunpack.c.l.b16 %v1828
    %v1974 = vunpack.c.h.b16 %v1828
    %v1975 = vunpack.c.l.b16 %v1829
    %v1976 = vunpack.c.h.b16 %v1829
    %v1977 = vunpack.c.l.b16 %v1830
    %v1978 = vunpack.c.h.b16 %v1830
    %v1979 = vunpack.c.l.b16 %v1831
    %v1980 = vunpack.c.h.b16 %v1831
    %v1981 = vunpack.c.l.b16 %v1832
    %v1982 = vunpack.c.h.b16 %v1832
    %v1983 = vunpack.c.l.b16 %v1833
    %v1984 = vunpack.c.h.b16 %v1833
    %v1985 = vunpack.c.l.b16 %v1834
    %v1986 = vunpack.c.h.b16 %v1834
    %v1987 = vunpack.c.l.b16 %v1835
    %v1988 = vunpack.c.h.b16 %v1835
    %v1989 = vunpack.c.l.b16 %v1836
    %v1990 = vunpack.c.h.b16 %v1836
    %v1991 = vunpack.c.l.b16 %v1837
    %v1992 = vunpack.c.h.b16 %v1837
    %v1993 = vunpack.c.l.b16 %v1838
    %v1994 = vunpack.c.h.b16 %v1838
    %v1995 = vunpack.c.l.b16 %v1839
    %v1996 = vunpack.c.h.b16 %v1839
    %v1997 = vunpack.c.l.b16 %v1840
    %v1998 = vunpack.c.h.b16 %v1840
    %v1999 = vunpack.c.l.b16 %v1841
    %v2000 = vunpack.c.h.b16 %v1841
    %v2001 = vunpack.c.l.b16 %v1842
    %v2002 = vunpack.c.h.b16 %v1842
    %v2003 = vunpack.c.l.b16 %v1843
    %v2004 = vunpack.c.h.b16 %v1843
    %v2005 = vunpack.c.l.b16 %v1844
    %v2006 = vunpack.c.h.b16 %v1844
    %v2007 = vunpack.c.l.b16 %v1845
    %v2008 = vunpack.c.h.b16 %v1845
    %v2009 = vunpack.c.l.b16 %v1846
    %v2010 = vunpack.c.h.b16 %v1846
    %v2011 = vunpack.c.l.b16 %v1847
    %v2012 = vunpack.c.h.b16 %v1847
    %v2013 = vunpack.c.l.b16 %v1848
    %v2014 = vunpack.c.h.b16 %v1848
    %v2015 = vunpack.c.l.b16 %v1849
    %v2016 = vunpack.c.h.b16 %v1849
    %v2017 = vunpack.c.l.b16 %v1850
    %v2018 = vunpack.c.h.b16 %v1850
    %v2019 = vunpack.c.l.b16 %v1851
    %v2020 = vunpack.c.h.b16 %v1851
    %v2021 = vunpack.c.l.b16 %v1852
    %v2022 = vunpack.c.h.b16 %v1852
    %v2023 = vunpack.c.l.b16 %v1853
    %v2024 = vunpack.c.h.b16 %v1853
    %v2025 = vunpack.c.l.b16 %v1854
    %v2026 = vunpack.c.h.b16 %v1854
    %v2027 = vunpack.c.l.b16 %v1855
    %v2028 = vunpack.c.h.b16 %v1855
    %v2029 = vunpack.c.l.b16 %v1856
    %v2030 = vunpack.c.h.b16 %v1856
    %v2031 = vunpack.c.l.b16 %v1857
    %v2032 = vunpack.c.h.b16 %v1857
    %v2033 = vunpack.c.l.b16 %v1858
    %v2034 = vunpack.c.h.b16 %v1858
    %v2035 = vunpack.c.l.b16 %v1859
    %v2036 = vunpack.c.h.b16 %v1859
    %v2037 = vunpack.c.l.b16 %v1860
    %v2038 = vunpack.c.h.b16 %v1860
    %v2039 = vunpack.c.l.b16 %v1861
    %v2040 = vunpack.c.h.b16 %v1861
    %v2041 = vunpack.c.l.b16 %v1862
    %v2042 = vunpack.c.h.b16 %v1862
    %v2043 = vunpack.c.l.b16 %v1863
    %v2044 = vunpack.c.h.b16 %v1863
    %v2045 = vunpack.c.l.b16 %v1864
    %v2046 = vunpack.c.h.b16 %v1864
    %v2047 = vunpack.c.l.b16 %v1865
    %v2048 = vunpack.c.h.b16 %v1865
    %v2049 = vunpack.c.l.b16 %v1866
    %v2050 = vunpack.c.h.b16 %v1866
    %v2051 = vunpack.c.l.b16 %v1867
    %v2052 = vunpack.c.h.b16 %v1867
    %v2053 = vunpack.c.l.b16 %v1868
    %v2054 = vunpack.c.h.b16 %v1868
    %v2055 = vunpack.c.l.b16 %v1869
    %v2056 = vunpack.c.h.b16 %v1869
    %v2057 = vunpack.c.l.b16 %v1870
    %v2058 = vunpack.c.h.b16 %v1870
    %v2059 = vunpack.c.l.b16 %v1871
    %v2060 = vunpack.c.h.b16 %v1871
    %v2061 = vunpack.c.l.b16 %v1872
    %v2062 = vunpack.c.h.b16 %v1872
    %v2063 = vunpack.c.l.b16 %v1873
    %v2064 = vunpack.c.h.b16 %v1873
    %v2065 = vunpack.c.l.b16 %v1874
    %v2066 = vunpack.c.h.b16 %v1874
    %v2067 = vunpack.c.l.b16 %v1875
    %v2068 = vunpack.c.h.b16 %v1875
    %v2069 = vunpack.c.l.b16 %v1876
    %v2070 = vunpack.c.h.b16 %v1876
    %v2071 = vunpack.c.l.b16 %v1877
    %v2072 = vunpack.c.h.b16 %v1877
    %v2073 = vunpack.c.l.b16 %v1878
    %v2074 = vunpack.c.h.b16 %v1878
    %v2075 = vunpack.c.l.b16 %v1879
    %v2076 = vunpack.c.h.b16 %v1879
    %v2077 = vunpack.c.l.b16 %v1880
    %v2078 = vunpack.c.h.b16 %v1880
    %v2079 = vunpack.c.l.b16 %v1881
    %v2080 = vunpack.c.h.b16 %v1881
    %v2081 = vunpack.c.l.b16 %v1882
    %v2082 = vunpack.c.h.b16 %v1882
    %v2083 = vpack.c.b16 %v1957, %v1955
    %v2084 = vpack.c.b16 %v1958, %v1956
    %v2085 = vpack.c.b16 %v1961, %v1959
    %v2086 = vpack.c.b16 %v1962, %v1960
    %v2087 = vpack.c.b16 %v1965, %v1963
    %v2088 = vpack.c.b16 %v1966, %v1964
    %v2089 = vpack.c.b16 %v1969, %v1967
    %v2090 = vpack.c.b16 %v1970, %v1968
    %v2091 = vpack.c.b16 %v1973, %v1971
    %v2092 = vpack.c.b16 %v1974, %v1972
    %v2093 = vpack.c.b16 %v1977, %v1975
    %v2094 = vpack.c.b16 %v1978, %v1976
    %v2095 = vpack.c.b16 %v1981, %v1979
    %v2096 = vpack.c.b16 %v1982, %v1980
    %v2097 = vpack.c.b16 %v1985, %v1983
    %v2098 = vpack.c.b16 %v1986, %v1984
    %v2099 = vpack.c.b16 %v1989, %v1987
    %v2100 = vpack.c.b16 %v1990, %v1988
    %v2101 = vpack.c.b16 %v1993, %v1991
    %v2102 = vpack.c.b16 %v1994, %v1992
    %v2103 = vpack.c.b16 %v1997, %v1995
    %v2104 = vpack.c.b16 %v1998, %v1996
    %v2105 = vpack.c.b16 %v2001, %v1999
    %v2106 = vpack.c.b16 %v2002, %v2000
    %v2107 = vpack.c.b16 %v2005, %v2003
    %v2108 = vpack.c.b16 %v2006, %v2004
    %v2109 = vpack.c.b16 %v2009, %v2007
    %v2110 = vpack.c.b16 %v2010, %v2008
    %v2111 = vpack.c.b16 %v2013, %v2011
    %v2112 = vpack.c.b16 %v2014, %v2012
    %v2113 = vpack.c.b16 %v2017, %v2015
    %v2114 = vpack.c.b16 %v2018, %v2016
    %v2115 = vpack.c.b16 %v2021, %v2019
    %v2116 = vpack.c.b16 %v2022, %v2020
    %v2117 = vpack.c.b16 %v2025, %v2023
    %v2118 = vpack.c.b16 %v2026, %v2024
    %v2119 = vpack.c.b16 %v2029, %v2027
    %v2120 = vpack.c.b16 %v2030, %v2028
    %v2121 = vpack.c.b16 %v2033, %v2031
    %v2122 = vpack.c.b16 %v2034, %v2032
    %v2123 = vpack.c.b16 %v2037, %v2035
    %v2124 = vpack.c.b16 %v2038, %v2036
    %v2125 = vpack.c.b16 %v2041, %v2039
    %v2126 = vpack.c.b16 %v2042, %v2040
    %v2127 = vpack.c.b16 %v2045, %v2043
    %v2128 = vpack.c.b16 %v2046, %v2044
    %v2129 = vpack.c.b16 %v2049, %v2047
    %v2130 = vpack.c.b16 %v2050, %v2048
    %v2131 = vpack.c.b16 %v2053, %v2051
    %v2132 = vpack.c.b16 %v2054, %v2052
    %v2133 = vpack.c.b16 %v2057, %v2055
    %v2134 = vpack.c.b16 %v2058, %v2056
    %v2135 = vpack.c.b16 %v2061, %v2059
    %v2136 = vpack.c.b16 %v2062, %v2060
    %v2137 = vpack.c.b16 %v2065, %v2063
    %v2138 = vpack.c.b16 %v2066, %v2064
    %v2139 = vpack.c.b16 %v2069, %v2067
    %v2140 = vpack.c.b16 %v2070, %v2068
    %v2141 = vpack.c.b16 %v2073, %v2071
    %v2142 = vpack.c.b16 %v2074, %v2072
    %v2143 = vpack.c.b16 %v2077, %v2075
    %v2144 = vpack.c.b16 %v2078, %v2076
    %v2145 = vpack.c.b16 %v2081, %v2079
    %v2146 = vpack.c.b16 %v2082, %v2080
    %2211 = vmatprep.subr.bf16.mxu0 %v2084
    %2212 = vmatpush1.bf16.msra.mxu0 %v2083
    %2213 = vmatprep.subr.bf16.mxu0 %v2086
    %2214 = vmatpush1.bf16.msra.mxu0 %v2085
    %2215 = vmatprep.subr.bf16.mxu0 %v2088
    %2216 = vmatpush1.bf16.msra.mxu0 %v2087
    %2217 = vmatprep.subr.bf16.mxu0 %v2090
    %2218 = vmatpush1.bf16.msra.mxu0 %v2089
    %2219 = vmatprep.subr.bf16.mxu0 %v2092
    %2220 = vmatpush1.bf16.msra.mxu0 %v2091
    %2221 = vmatprep.subr.bf16.mxu0 %v2094
    %2222 = vmatpush1.bf16.msra.mxu0 %v2093
    %2223 = vmatprep.subr.bf16.mxu0 %v2096
    %2224 = vmatpush1.bf16.msra.mxu0 %v2095
    %2225 = vmatprep.subr.bf16.mxu0 %v2098
    %2226 = vmatpush1.bf16.msra.mxu0 %v2097
    %2227 = vmatprep.subr.bf16.mxu0 %v2100
    %2228 = vmatpush1.bf16.msra.mxu0 %v2099
    %2229 = vmatprep.subr.bf16.mxu0 %v2102
    %2230 = vmatpush1.bf16.msra.mxu0 %v2101
    %2231 = vmatprep.subr.bf16.mxu0 %v2104
    %2232 = vmatpush1.bf16.msra.mxu0 %v2103
    %2233 = vmatprep.subr.bf16.mxu0 %v2106
    %2234 = vmatpush1.bf16.msra.mxu0 %v2105
    %2235 = vmatprep.subr.bf16.mxu0 %v2108
    %2236 = vmatpush1.bf16.msra.mxu0 %v2107
    %2237 = vmatprep.subr.bf16.mxu0 %v2110
    %2238 = vmatpush1.bf16.msra.mxu0 %v2109
    %2239 = vmatprep.subr.bf16.mxu0 %v2112
    %2240 = vmatpush1.bf16.msra.mxu0 %v2111
    %2241 = vmatprep.subr.bf16.mxu0 %v2114
    %2242 = vmatpush1.bf16.msra.mxu0 %v2113
    %2243 = vmatprep.mubr.bf16.mxu0 %v1816
    %2244 = vmatmul.mubr.bf16.gmra.mrb[0].mxu0 %v1815
    %v2245 = vpop.f32.mrb[0].mxu0
    %v2246 = vadd.f32 %v1886, %v2245
    %v2247 = vpop.f32.mrb[0].mxu0
    %v2248 = vadd.f32 %v1890, %v2247
    %v2249 = vpop.f32.mrb[0].mxu0
    %v2250 = vadd.f32 %v1886, %v2249
    %v2251 = vpop.f32.mrb[0].mxu0
    %v2252 = vadd.f32 %v1890, %v2251
    %2253 = vdwg.mxu0
    %2254 = vmatprep.subr.bf16.mxu0 %v2116
    %2255 = vmatpush1.bf16.msra.mxu0 %v2115
    %2256 = vmatprep.subr.bf16.mxu0 %v2118
    %2257 = vmatpush1.bf16.msra.mxu0 %v2117
    %2258 = vmatprep.subr.bf16.mxu0 %v2120
    %2259 = vmatpush1.bf16.msra.mxu0 %v2119
    %2260 = vmatprep.subr.bf16.mxu0 %v2122
    %2261 = vmatpush1.bf16.msra.mxu0 %v2121
    %2262 = vmatprep.subr.bf16.mxu0 %v2124
    %2263 = vmatpush1.bf16.msra.mxu0 %v2123
    %2264 = vmatprep.subr.bf16.mxu0 %v2126
    %2265 = vmatpush1.bf16.msra.mxu0 %v2125
    %2266 = vmatprep.subr.bf16.mxu0 %v2128
    %2267 = vmatpush1.bf16.msra.mxu0 %v2127
    %2268 = vmatprep.subr.bf16.mxu0 %v2130
    %2269 = vmatpush1.bf16.msra.mxu0 %v2129
    %2270 = vmatprep.subr.bf16.mxu0 %v2132
    %2271 = vmatpush1.bf16.msra.mxu0 %v2131
    %2272 = vmatprep.subr.bf16.mxu0 %v2134
    %2273 = vmatpush1.bf16.msra.mxu0 %v2133
    %2274 = vmatprep.subr.bf16.mxu0 %v2136
    %2275 = vmatpush1.bf16.msra.mxu0 %v2135
    %2276 = vmatprep.subr.bf16.mxu0 %v2138
    %2277 = vmatpush1.bf16.msra.mxu0 %v2137
    %2278 = vmatprep.subr.bf16.mxu0 %v2140
    %2279 = vmatpush1.bf16.msra.mxu0 %v2139
    %2280 = vmatprep.subr.bf16.mxu0 %v2142
    %2281 = vmatpush1.bf16.msra.mxu0 %v2141
    %2282 = vmatprep.subr.bf16.mxu0 %v2144
    %2283 = vmatpush1.bf16.msra.mxu0 %v2143
    %2284 = vmatprep.subr.bf16.mxu0 %v2146
    %2285 = vmatpush1.bf16.msra.mxu0 %v2145
    %2286 = vmatprep.mubr.bf16.mxu0 %v1818
    %2287 = vmatmul.mubr.bf16.gmra.mrb[0].mxu0 %v1817
    %v2288 = vpop.f32.mrb[0].mxu0
    %v2289 = vadd.f32 %v2246, %v2288
    %v2290 = vpop.f32.mrb[0].mxu0
    %v2291 = vadd.f32 %v2248, %v2290
    %v2292 = vpop.f32.mrb[0].mxu0
    %v2293 = vadd.f32 %v2250, %v2292
    %v2294 = vpop.f32.mrb[0].mxu0
    %v2295 = vadd.f32 %v2252, %v2294
    %2296 = vdwg.mxu0
    %v2297 = vadd.f32 %v1277, %v2289
    %v2298 = vadd.f32 %v1278, %v2291
    %v2299 = vadd.f32 %v1279, %v2293
    %v2300 = vadd.f32 %v1280, %v2295
    %v2301 = vadd.f32 %v2297, %v2298
    %2302 = vadd.xlane.f32.xlu0 %v2301
    %v2303 = vpop.xlane.xlu0 %2302
    %v2304 = vadd.f32 %v2299, %v2300
    %2305 = vadd.xlane.f32.xlu0 %v2304
    %v2306 = vpop.xlane.xlu0 %2305
    %v2307 = vmul.f32 %v2303, %v1230
    %v2308 = vmul.f32 %v2306, %v1230
    %v2309 = vsub.f32 %v2297, %v2307
    %v2310 = vsub.f32 %v2298, %v2307
    %v2311 = vsub.f32 %v2299, %v2308
    %v2312 = vsub.f32 %v2300, %v2308
    %v2313 = vmul.f32 %v2309, %v2309
    %v2314 = vmul.f32 %v2310, %v2310
    %v2315 = vmul.f32 %v2311, %v2311
    %v2316 = vmul.f32 %v2312, %v2312
    %v2317 = vadd.f32 %v2313, %v2314
    %2318 = vadd.xlane.f32.xlu0 %v2317
    %v2319 = vpop.xlane.xlu0 %2318
    %v2320 = vadd.f32 %v2315, %v2316
    %2321 = vadd.xlane.f32.xlu0 %v2320
    %v2322 = vpop.xlane.xlu0 %2321
    %v2323 = vmul.f32 %v2319, %v1230
    %v2324 = vmul.f32 %v2322, %v1230
    %v2325 = vadd.f32 %v2323, 1e-05
    %v2326 = vadd.f32 %v2324, 1e-05
    %v2327 = vrsqrt.pop %v2325
    %v2328 = vrsqrt.pop %v2326
    %v2329 = vmul.f32 %v2309, %v2327
    %v2330 = vmul.f32 %v2310, %v2327
    %v2331 = vmul.f32 %v2311, %v2328
    %v2332 = vmul.f32 %v2312, %v2328
    %v2333 = vlaneseq
    %v2334 = vshrl.u32 %v2333, 7
    %v2335 = vsub.s32 2, %v2334
    %v2336 = vrot.slane %v1218, %v2335
    %v2337 = vlaneseq
    %v2338 = vshrl.u32 %v2337, 7
    %v2339 = vsub.s32 2, %v2338
    %v2340 = vrot.slane %v1219, %v2339
    %v2341 = vmul.f32 %v2329, %v2336
    %v2342 = vmul.f32 %v2330, %v2340
    %v2343 = vmul.f32 %v2331, %v2336
    %v2344 = vmul.f32 %v2332, %v2340
    %v2345 = vlaneseq
    %v2346 = vshrl.u32 %v2345, 7
    %v2347 = vsub.s32 3, %v2346
    %v2348 = vrot.slane %v1218, %v2347
    %v2349 = vlaneseq
    %v2350 = vshrl.u32 %v2349, 7
    %v2351 = vsub.s32 3, %v2350
    %v2352 = vrot.slane %v1219, %v2351
    %v2353 = vadd.f32 %v2341, %v2348
    %v2354 = vadd.f32 %v2342, %v2352
    %v2355 = vadd.f32 %v2343, %v2348
    %v2356 = vadd.f32 %v2344, %v2352
    %2357 = vst [vmem:[#allocation11] sm:$0xff] %v2353
    %2358 = vst [vmem:[#allocation11 + $0x8] sm:$0xff] %v2354
    %2359 = vst [vmem:[#allocation11 + $0x10] sm:$0xff] %v2355
    %2360 = vst [vmem:[#allocation11 + $0x18] sm:$0xff] %v2356
    // Predicated region
    $region46: #{tpu_custom_call.1} parent=1 // pred_check
      _
    $region47: #{tpu_custom_call.1} parent=1 // pred_check_branch
      %2362 = sbr.rel (0) target = $region49
    $region48: #{tpu_custom_call.1} parent=1 // pred_region
      %s2364 = ssub.s32 512, 512
      %2365 = vsyncadd [#allocation4], %s2364
      %s2366 = sshll.u32 [#allocation11], 4
      %s2367 = int_to_ptr.vmem [resolvable:$true] %s2366
      %2372 = dma.vmem_to_hbm [thread:$0]  %s2367, 512, %s6, [#allocation4], 256, 256, 16
    $region49: #{tpu_custom_call.1} parent=1 // pred_fallthru
      _
    // Predicated region
    $region50: #{tpu_custom_call.1} parent=1 // pred_check
      _
    $region51: #{tpu_custom_call.1} parent=1 // pred_check_branch
      %2374 = sbr.rel (0) target = $region53
    $region52: #{tpu_custom_call.1} parent=1 // pred_region
      %2375 = dma.done [#allocation4], 512
    $region53: #{tpu_custom_call.1} parent=1 // pred_fallthru
      _
    %2376 = vsyncpa [#allocation3], 1
    %2377 = vsyncpa [#allocation6], 1
    %2378 = vsyncpa [#allocation9], 1
    %2379 = vsyncpa [#allocation4], 1

</llo_original>
